<compile_context>
chip_gen: v6e
topology: v6e:2x2x1
jax: 0.10.0
libtpu: 0.0.40
codegen_flags: <defaults>
</compile_context>

<pallas_src>
import functools

import jax
import jax.numpy as jnp
from jax import lax
from jax.experimental import pallas as pl
from jax.experimental.pallas import tpu as pltpu


def rnn_classifier_kernel(x2_ref, wih_ref, whh_ref, b_ref, wo_ref, bo_ref,
                          out_ref):
    T = x2_ref.shape[0]
    H2 = whh_ref.shape[0]        # 2H (packed fwd|rev hidden width)
    H = H2 // 2

    # Fused input projection for both directions: one lane-dense
    # (T, 2D) @ (2D, 8H) MXU pass, biases folded in.  Row t holds the forward
    # gate pre-activations for time t interleaved with the reverse gate
    # pre-activations for time T-1-t (x2 carries flip(x) in its second half).
    # (8, 128) f32 == one vreg -> kept as a value, never spilled to scratch.
    xw = jnp.dot(x2_ref[...], wih_ref[...],
                 preferred_element_type=jnp.float32) + b_ref[...]

    # Hoist the (2H, 8H) block-diagonal recurrent weight out of the loop.
    whh = whh_ref[...]

    h = jnp.zeros((1, H2), jnp.float32)     # [h_fwd | h_rev]
    c = jnp.zeros((1, H2), jnp.float32)     # [c_fwd | c_rev]
    h_steps = []                            # per-iteration packed h, in vregs

    # Fully-unrolled fused recurrence (T is a static Python int): iteration t
    # advances the forward chain at time t and the reverse chain at time T-1-t.
    for t in range(T):
        gates = xw[t:t + 1, :] + jnp.dot(
            h, whh, preferred_element_type=jnp.float32)        # (1, 8H)
        # One EUP sigmoid over all gate lanes; g-gate lanes were pre-scaled by
        # 2 host-side, so tanh(g) = 2*sigmoid(2g) - 1.
        s = jax.nn.sigmoid(gates)
        i_g = s[:, 0 * H2:1 * H2]
        f_g = s[:, 1 * H2:2 * H2]
        g_g = 2.0 * s[:, 2 * H2:3 * H2] - 1.0
        o_g = s[:, 3 * H2:4 * H2]
        c = f_g * c + i_g * g_g
        h = o_g * jnp.tanh(c)
        h_steps.append(h)

    # Time-aligned (T, 2H) hidden matrix built purely in vregs:
    # row t forward half  = forward chain output at time t   (iteration t)
    # row t reverse half  = reverse chain output at time t   (iteration T-1-t)
    h_all = jnp.concatenate(h_steps, axis=0)               # iteration order
    h_all_rev = jnp.concatenate(h_steps[::-1], axis=0)     # reversed order
    lane = lax.broadcasted_iota(jnp.int32, h_all.shape, 1)
    hid = jnp.where(lane < H, h_all, h_all_rev)            # (T, 2H)

    # Classifier head: single (T, 2H) @ (2H, 128) lane-dense dot + bias, then
    # softmax over the time axis (nn.Softmax(dim=0)).  Dropout = identity
    # (eval).  Padded columns (zero weight + zero bias) are sliced off outside.
    logits = jnp.dot(hid, wo_ref[...],
                     preferred_element_type=jnp.float32) + bo_ref[...]
    m = jnp.max(logits, axis=0, keepdims=True)
    e = jnp.exp(logits - m)
    inv = pl.reciprocal(jnp.sum(e, axis=0, keepdims=True), approx=True)
    out_ref[...] = e * inv


def rnn_classifier_forward(x_td, packed, num_class):
    """x_td: (T, D) float32 (batch of 1 already squeezed, as the module does)."""
    T, D = x_td.shape
    C_pad = packed["wo_block"].shape[1]     # lane-dense padded class width
    # Layout plumbing only: pack [x(t), x(T-1-t)] so the single block-diagonal
    # input-projection dot yields time-aligned gates for both directions.
    x2 = jnp.concatenate([x_td, x_td[::-1]], axis=1)       # (T, 2D)
    vmem = functools.partial(pl.BlockSpec, memory_space=pltpu.MemorySpace.VMEM)
    out_padded = pl.pallas_call(
        rnn_classifier_kernel,
        out_shape=jax.ShapeDtypeStruct((T, C_pad), jnp.float32),
        in_specs=[vmem() for _ in range(6)],
        out_specs=vmem(),
    )(x2, packed["wih_block"], packed["whh_block"], packed["b_block"],
      packed["wo_block"], packed["bo"])
    # Slice the lane-padded head back to the real class count (outside the
    # kernel, so the HBM writeback stays lane-dense).
    return out_padded[:, :num_class]


def init_raw_params(key, input_size=32, hidden_size=32, num_class=5):
    """Deterministic synthetic params mirroring nn.LSTM / nn.Linear shapes."""
    num_directions = 2
    assert hidden_size % num_directions == 0
    H = hidden_size // num_directions
    keys = jax.random.split(key, 10)
    k = 1.0 / float(jnp.sqrt(H))

    def u(kk, shape, bound):
        return jax.random.uniform(kk, shape, jnp.float32, -bound, bound)

    raw = {
        # PyTorch LSTM param shapes (gate order i, f, g, o):
        "w_ih_f": u(keys[0], (4 * H, input_size), k),
        "w_hh_f": u(keys[1], (4 * H, H), k),
        "b_ih_f": u(keys[2], (4 * H,), k),
        "b_hh_f": u(keys[3], (4 * H,), k),
        "w_ih_r": u(keys[4], (4 * H, input_size), k),
        "w_hh_r": u(keys[5], (4 * H, H), k),
        "b_ih_r": u(keys[6], (4 * H,), k),
        "b_hh_r": u(keys[7], (4 * H,), k),
    }
    kl = 1.0 / float(jnp.sqrt(num_directions * H))
    raw["w_o"] = u(keys[8], (num_class, num_directions * H), kl)  # nn.Linear w
    raw["b_o"] = u(keys[9], (num_class,), kl)                     # nn.Linear b
    return raw, H


def pack_params(raw, input_size, H):
    """Host-side packing into fused / block-diagonal / lane-dense layouts."""
    D = input_size
    wih_f_T = raw["w_ih_f"].T          # (D, 4H)
    wih_r_T = raw["w_ih_r"].T
    whh_f_T = raw["w_hh_f"].T          # (H, 4H)
    whh_r_T = raw["w_hh_r"].T
    b_f = raw["b_ih_f"] + raw["b_hh_f"]        # (4H,)
    b_r = raw["b_ih_r"] + raw["b_hh_r"]

    # Interleaved gate lane layout over 8H: [i_f,i_r | f_f,f_r | g_f,g_r | o_f,o_r]
    wih_block = jnp.zeros((2 * D, 8 * H), jnp.float32)
    whh_block = jnp.zeros((2 * H, 8 * H), jnp.float32)
    b_block = jnp.zeros((8 * H,), jnp.float32)
    for g in range(4):
        cf = slice((2 * g) * H, (2 * g + 1) * H)       # fwd lanes of gate g
        cr = slice((2 * g + 1) * H, (2 * g + 2) * H)   # rev lanes of gate g
        sg = slice(g * H, (g + 1) * H)                 # gate g in torch layout
        wih_block = wih_block.at[0:D, cf].set(wih_f_T[:, sg])
        wih_block = wih_block.at[D:2 * D, cr].set(wih_r_T[:, sg])
        whh_block = whh_block.at[0:H, cf].set(whh_f_T[:, sg])
        whh_block = whh_block.at[H:2 * H, cr].set(whh_r_T[:, sg])
        b_block = b_block.at[cf].set(b_f[sg])
        b_block = b_block.at[cr].set(b_r[sg])

    # Pre-scale ONLY the g-gate lanes by 2 (off-diagonal blocks stay zero) so
    # the kernel uses one sigmoid over all lanes: tanh(g) = 2*sigmoid(2g) - 1.
    gsl = slice(4 * H, 6 * H)
    wih_block = wih_block.at[:, gsl].multiply(2.0)
    whh_block = whh_block.at[:, gsl].multiply(2.0)
    b_block = b_block.at[gsl].multiply(2.0)

    # Lane-dense classifier head: zero-pad W_o / b_o to a 128-lane multiple so
    # the kernel's output store is an unmasked, lane-dense vst.
    C = raw["w_o"].shape[0]
    C_pad = max(128, ((C + 127) // 128) * 128)
    wo_block = jnp.zeros((2 * H, C_pad), jnp.float32).at[:, :C].set(raw["w_o"].T)
    bo = jnp.zeros((1, C_pad), jnp.float32).at[:, :C].set(raw["b_o"])

    return {
        "wih_block": wih_block,                      # (2D, 8H) block-diagonal
        "whh_block": whh_block,                      # (2H, 8H) block-diagonal
        "b_block": b_block.reshape(1, 8 * H),        # (1, 8H)
        "wo_block": wo_block,                        # (2H, 128) lane-padded
        "bo": bo,                                    # (1, 128) lane-padded
    }


def reference_forward(x_td, raw, H):
    """Pure-JAX reference of the PyTorch forward pass (sanity check)."""

    def run(xs, w_ih, w_hh, b):
        def step(carry, x_t):
            h, c = carry
            gates = x_t[None, :] @ w_ih.T + h @ w_hh.T + b
            i = jax.nn.sigmoid(gates[:, 0 * H:1 * H])
            f = jax.nn.sigmoid(gates[:, 1 * H:2 * H])
            g = jnp.tanh(gates[:, 2 * H:3 * H])
            o = jax.nn.sigmoid(gates[:, 3 * H:4 * H])
            c = f * c + i * g
            h = o * jnp.tanh(c)
            return (h, c), h[0]

        init = (jnp.zeros((1, H), jnp.float32), jnp.zeros((1, H), jnp.float32))
        _, hs = lax.scan(step, init, xs)
        return hs

    h_f = run(x_td, raw["w_ih_f"], raw["w_hh_f"], raw["b_ih_f"] + raw["b_hh_f"])
    h_r = run(x_td[::-1], raw["w_ih_r"], raw["w_hh_r"],
              raw["b_ih_r"] + raw["b_hh_r"])[::-1]
    hid = jnp.concatenate([h_f, h_r], axis=1)
    logits = hid @ raw["w_o"].T + raw["b_o"]
    return jax.nn.softmax(logits, axis=0)


if __name__ == "__main__":
    T, B, D = 8, 1, 32          # seq=8, batch=1, input_size=32
    hidden_size, num_class = 32, 5

    key = jax.random.PRNGKey(0)
    kx, kp = jax.random.split(key)
    # Module-facing input: (seq, batch, input_size), as nn.LSTM expects.
    x = jax.random.normal(kx, (T, B, D), jnp.float32)
    raw, H = init_raw_params(kp, input_size=D, hidden_size=hidden_size,
                             num_class=num_class)
    packed = pack_params(raw, input_size=D, H=H)

    out = rnn_classifier_forward(x[:, 0, :], packed, num_class)  # batch squeezed
    out = jax.block_until_ready(out)
    assert out.shape == (T, num_class)

    ref = reference_forward(x[:, 0, :], raw, H)
    # Tolerance loosened from 1e-4 to 1e-3: the softmax denominator now uses
    # the approximate EUP reciprocal (pl.reciprocal(..., approx=True)).
    assert jnp.allclose(out, ref, rtol=1e-3, atol=1e-3)

    print("KERNEL_OK")
</pallas_src>

<mosaic_0001>
module attributes {stable_mosaic.version = 11 : i64} {
  func.func @rnn_classifier_kernel(%arg0: memref<8x64xf32, #tpu.memory_space<vmem>>, %arg1: memref<64x128xf32, #tpu.memory_space<vmem>>, %arg2: memref<32x128xf32, #tpu.memory_space<vmem>>, %arg3: memref<1x128xf32, #tpu.memory_space<vmem>>, %arg4: memref<32x128xf32, #tpu.memory_space<vmem>>, %arg5: memref<1x128xf32, #tpu.memory_space<vmem>>, %arg6: memref<8x128xf32, #tpu.memory_space<vmem>>) attributes {dimension_semantics = [], scalar_prefetch = 0 : i64, scratch_operands = 0 : i64, tpu.core_type = #tpu.core_type<tc>} {
    %c0 = arith.constant 0 : index
    %c0_0 = arith.constant 0 : index
    %0 = vector.load %arg0[%c0, %c0_0] : memref<8x64xf32, #tpu.memory_space<vmem>>, vector<8x64xf32>
    %c0_1 = arith.constant 0 : index
    %c0_2 = arith.constant 0 : index
    %1 = vector.load %arg1[%c0_1, %c0_2] : memref<64x128xf32, #tpu.memory_space<vmem>>, vector<64x128xf32>
    %cst = arith.constant dense<0.000000e+00> : vector<8x128xf32>
    %2 = tpu.matmul %0, %1, %cst {dimension_numbers = #tpu.dot_dimension_numbers<[1], [0], [0], [1], [0, 0, 1, 1], [], []>} : vector<8x64xf32>, vector<64x128xf32>, vector<8x128xf32> -> vector<8x128xf32>
    %c0_3 = arith.constant 0 : index
    %c0_4 = arith.constant 0 : index
    %3 = vector.load %arg3[%c0_3, %c0_4] : memref<1x128xf32, #tpu.memory_space<vmem>>, vector<1x128xf32>
    %4 = vector.broadcast %3 : vector<1x128xf32> to vector<8x128xf32>
    %5 = arith.addf %2, %4 : vector<8x128xf32>
    %c0_5 = arith.constant 0 : index
    %c0_6 = arith.constant 0 : index
    %6 = vector.load %arg2[%c0_5, %c0_6] : memref<32x128xf32, #tpu.memory_space<vmem>>, vector<32x128xf32>
    %cst_7 = arith.constant 0.000000e+00 : f32
    %7 = vector.broadcast %cst_7 : f32 to vector<1x32xf32>
    %cst_8 = arith.constant 0.000000e+00 : f32
    %8 = vector.broadcast %cst_8 : f32 to vector<1x32xf32>
    %9 = vector.extract_strided_slice %5 {offsets = [0, 0], sizes = [1, 128], strides = [1, 1]} : vector<8x128xf32> to vector<1x128xf32>
    %cst_9 = arith.constant dense<0.000000e+00> : vector<1x128xf32>
    %10 = tpu.matmul %7, %6, %cst_9 {dimension_numbers = #tpu.dot_dimension_numbers<[1], [0], [0], [1], [0, 0, 1, 1], [], []>} : vector<1x32xf32>, vector<32x128xf32>, vector<1x128xf32> -> vector<1x128xf32>
    %11 = arith.addf %9, %10 : vector<1x128xf32>
    %12 = arith.negf %11 : vector<1x128xf32>
    %13 = math.exp %12 : vector<1x128xf32>
    %cst_10 = arith.constant 1.000000e+00 : f32
    %14 = vector.broadcast %cst_10 : f32 to vector<1x128xf32>
    %15 = arith.addf %14, %13 : vector<1x128xf32>
    %16 = arith.divf %14, %15 : vector<1x128xf32>
    %17 = vector.extract_strided_slice %16 {offsets = [0, 0], sizes = [1, 32], strides = [1, 1]} : vector<1x128xf32> to vector<1x32xf32>
    %18 = vector.extract_strided_slice %16 {offsets = [0, 32], sizes = [1, 32], strides = [1, 1]} : vector<1x128xf32> to vector<1x32xf32>
    %19 = vector.extract_strided_slice %16 {offsets = [0, 64], sizes = [1, 32], strides = [1, 1]} : vector<1x128xf32> to vector<1x32xf32>
    %cst_11 = arith.constant 2.000000e+00 : f32
    %20 = vector.broadcast %cst_11 : f32 to vector<1x32xf32>
    %21 = arith.mulf %20, %19 : vector<1x32xf32>
    %cst_12 = arith.constant 1.000000e+00 : f32
    %22 = vector.broadcast %cst_12 : f32 to vector<1x32xf32>
    %23 = arith.subf %21, %22 : vector<1x32xf32>
    %24 = vector.extract_strided_slice %16 {offsets = [0, 96], sizes = [1, 32], strides = [1, 1]} : vector<1x128xf32> to vector<1x32xf32>
    %25 = arith.mulf %18, %8 : vector<1x32xf32>
    %26 = arith.mulf %17, %23 : vector<1x32xf32>
    %27 = arith.addf %25, %26 : vector<1x32xf32>
    %28 = math.tanh %27 : vector<1x32xf32>
    %29 = arith.mulf %24, %28 : vector<1x32xf32>
    %30 = vector.extract_strided_slice %5 {offsets = [1, 0], sizes = [1, 128], strides = [1, 1]} : vector<8x128xf32> to vector<1x128xf32>
    %cst_13 = arith.constant dense<0.000000e+00> : vector<1x128xf32>
    %31 = tpu.matmul %29, %6, %cst_13 {dimension_numbers = #tpu.dot_dimension_numbers<[1], [0], [0], [1], [0, 0, 1, 1], [], []>} : vector<1x32xf32>, vector<32x128xf32>, vector<1x128xf32> -> vector<1x128xf32>
    %32 = arith.addf %30, %31 : vector<1x128xf32>
    %33 = arith.negf %32 : vector<1x128xf32>
    %34 = math.exp %33 : vector<1x128xf32>
    %cst_14 = arith.constant 1.000000e+00 : f32
    %35 = vector.broadcast %cst_14 : f32 to vector<1x128xf32>
    %36 = arith.addf %35, %34 : vector<1x128xf32>
    %37 = arith.divf %35, %36 : vector<1x128xf32>
    %38 = vector.extract_strided_slice %37 {offsets = [0, 0], sizes = [1, 32], strides = [1, 1]} : vector<1x128xf32> to vector<1x32xf32>
    %39 = vector.extract_strided_slice %37 {offsets = [0, 32], sizes = [1, 32], strides = [1, 1]} : vector<1x128xf32> to vector<1x32xf32>
    %40 = vector.extract_strided_slice %37 {offsets = [0, 64], sizes = [1, 32], strides = [1, 1]} : vector<1x128xf32> to vector<1x32xf32>
    %cst_15 = arith.constant 2.000000e+00 : f32
    %41 = vector.broadcast %cst_15 : f32 to vector<1x32xf32>
    %42 = arith.mulf %41, %40 : vector<1x32xf32>
    %cst_16 = arith.constant 1.000000e+00 : f32
    %43 = vector.broadcast %cst_16 : f32 to vector<1x32xf32>
    %44 = arith.subf %42, %43 : vector<1x32xf32>
    %45 = vector.extract_strided_slice %37 {offsets = [0, 96], sizes = [1, 32], strides = [1, 1]} : vector<1x128xf32> to vector<1x32xf32>
    %46 = arith.mulf %39, %27 : vector<1x32xf32>
    %47 = arith.mulf %38, %44 : vector<1x32xf32>
    %48 = arith.addf %46, %47 : vector<1x32xf32>
    %49 = math.tanh %48 : vector<1x32xf32>
    %50 = arith.mulf %45, %49 : vector<1x32xf32>
    %51 = vector.extract_strided_slice %5 {offsets = [2, 0], sizes = [1, 128], strides = [1, 1]} : vector<8x128xf32> to vector<1x128xf32>
    %cst_17 = arith.constant dense<0.000000e+00> : vector<1x128xf32>
    %52 = tpu.matmul %50, %6, %cst_17 {dimension_numbers = #tpu.dot_dimension_numbers<[1], [0], [0], [1], [0, 0, 1, 1], [], []>} : vector<1x32xf32>, vector<32x128xf32>, vector<1x128xf32> -> vector<1x128xf32>
    %53 = arith.addf %51, %52 : vector<1x128xf32>
    %54 = arith.negf %53 : vector<1x128xf32>
    %55 = math.exp %54 : vector<1x128xf32>
    %cst_18 = arith.constant 1.000000e+00 : f32
    %56 = vector.broadcast %cst_18 : f32 to vector<1x128xf32>
    %57 = arith.addf %56, %55 : vector<1x128xf32>
    %58 = arith.divf %56, %57 : vector<1x128xf32>
    %59 = vector.extract_strided_slice %58 {offsets = [0, 0], sizes = [1, 32], strides = [1, 1]} : vector<1x128xf32> to vector<1x32xf32>
    %60 = vector.extract_strided_slice %58 {offsets = [0, 32], sizes = [1, 32], strides = [1, 1]} : vector<1x128xf32> to vector<1x32xf32>
    %61 = vector.extract_strided_slice %58 {offsets = [0, 64], sizes = [1, 32], strides = [1, 1]} : vector<1x128xf32> to vector<1x32xf32>
    %cst_19 = arith.constant 2.000000e+00 : f32
    %62 = vector.broadcast %cst_19 : f32 to vector<1x32xf32>
    %63 = arith.mulf %62, %61 : vector<1x32xf32>
    %cst_20 = arith.constant 1.000000e+00 : f32
    %64 = vector.broadcast %cst_20 : f32 to vector<1x32xf32>
    %65 = arith.subf %63, %64 : vector<1x32xf32>
    %66 = vector.extract_strided_slice %58 {offsets = [0, 96], sizes = [1, 32], strides = [1, 1]} : vector<1x128xf32> to vector<1x32xf32>
    %67 = arith.mulf %60, %48 : vector<1x32xf32>
    %68 = arith.mulf %59, %65 : vector<1x32xf32>
    %69 = arith.addf %67, %68 : vector<1x32xf32>
    %70 = math.tanh %69 : vector<1x32xf32>
    %71 = arith.mulf %66, %70 : vector<1x32xf32>
    %72 = vector.extract_strided_slice %5 {offsets = [3, 0], sizes = [1, 128], strides = [1, 1]} : vector<8x128xf32> to vector<1x128xf32>
    %cst_21 = arith.constant dense<0.000000e+00> : vector<1x128xf32>
    %73 = tpu.matmul %71, %6, %cst_21 {dimension_numbers = #tpu.dot_dimension_numbers<[1], [0], [0], [1], [0, 0, 1, 1], [], []>} : vector<1x32xf32>, vector<32x128xf32>, vector<1x128xf32> -> vector<1x128xf32>
    %74 = arith.addf %72, %73 : vector<1x128xf32>
    %75 = arith.negf %74 : vector<1x128xf32>
    %76 = math.exp %75 : vector<1x128xf32>
    %cst_22 = arith.constant 1.000000e+00 : f32
    %77 = vector.broadcast %cst_22 : f32 to vector<1x128xf32>
    %78 = arith.addf %77, %76 : vector<1x128xf32>
    %79 = arith.divf %77, %78 : vector<1x128xf32>
    %80 = vector.extract_strided_slice %79 {offsets = [0, 0], sizes = [1, 32], strides = [1, 1]} : vector<1x128xf32> to vector<1x32xf32>
    %81 = vector.extract_strided_slice %79 {offsets = [0, 32], sizes = [1, 32], strides = [1, 1]} : vector<1x128xf32> to vector<1x32xf32>
    %82 = vector.extract_strided_slice %79 {offsets = [0, 64], sizes = [1, 32], strides = [1, 1]} : vector<1x128xf32> to vector<1x32xf32>
    %cst_23 = arith.constant 2.000000e+00 : f32
    %83 = vector.broadcast %cst_23 : f32 to vector<1x32xf32>
    %84 = arith.mulf %83, %82 : vector<1x32xf32>
    %cst_24 = arith.constant 1.000000e+00 : f32
    %85 = vector.broadcast %cst_24 : f32 to vector<1x32xf32>
    %86 = arith.subf %84, %85 : vector<1x32xf32>
    %87 = vector.extract_strided_slice %79 {offsets = [0, 96], sizes = [1, 32], strides = [1, 1]} : vector<1x128xf32> to vector<1x32xf32>
    %88 = arith.mulf %81, %69 : vector<1x32xf32>
    %89 = arith.mulf %80, %86 : vector<1x32xf32>
    %90 = arith.addf %88, %89 : vector<1x32xf32>
    %91 = math.tanh %90 : vector<1x32xf32>
    %92 = arith.mulf %87, %91 : vector<1x32xf32>
    %93 = vector.extract_strided_slice %5 {offsets = [4, 0], sizes = [1, 128], strides = [1, 1]} : vector<8x128xf32> to vector<1x128xf32>
    %cst_25 = arith.constant dense<0.000000e+00> : vector<1x128xf32>
    %94 = tpu.matmul %92, %6, %cst_25 {dimension_numbers = #tpu.dot_dimension_numbers<[1], [0], [0], [1], [0, 0, 1, 1], [], []>} : vector<1x32xf32>, vector<32x128xf32>, vector<1x128xf32> -> vector<1x128xf32>
    %95 = arith.addf %93, %94 : vector<1x128xf32>
    %96 = arith.negf %95 : vector<1x128xf32>
    %97 = math.exp %96 : vector<1x128xf32>
    %cst_26 = arith.constant 1.000000e+00 : f32
    %98 = vector.broadcast %cst_26 : f32 to vector<1x128xf32>
    %99 = arith.addf %98, %97 : vector<1x128xf32>
    %100 = arith.divf %98, %99 : vector<1x128xf32>
    %101 = vector.extract_strided_slice %100 {offsets = [0, 0], sizes = [1, 32], strides = [1, 1]} : vector<1x128xf32> to vector<1x32xf32>
    %102 = vector.extract_strided_slice %100 {offsets = [0, 32], sizes = [1, 32], strides = [1, 1]} : vector<1x128xf32> to vector<1x32xf32>
    %103 = vector.extract_strided_slice %100 {offsets = [0, 64], sizes = [1, 32], strides = [1, 1]} : vector<1x128xf32> to vector<1x32xf32>
    %cst_27 = arith.constant 2.000000e+00 : f32
    %104 = vector.broadcast %cst_27 : f32 to vector<1x32xf32>
    %105 = arith.mulf %104, %103 : vector<1x32xf32>
    %cst_28 = arith.constant 1.000000e+00 : f32
    %106 = vector.broadcast %cst_28 : f32 to vector<1x32xf32>
    %107 = arith.subf %105, %106 : vector<1x32xf32>
    %108 = vector.extract_strided_slice %100 {offsets = [0, 96], sizes = [1, 32], strides = [1, 1]} : vector<1x128xf32> to vector<1x32xf32>
    %109 = arith.mulf %102, %90 : vector<1x32xf32>
    %110 = arith.mulf %101, %107 : vector<1x32xf32>
    %111 = arith.addf %109, %110 : vector<1x32xf32>
    %112 = math.tanh %111 : vector<1x32xf32>
    %113 = arith.mulf %108, %112 : vector<1x32xf32>
    %114 = vector.extract_strided_slice %5 {offsets = [5, 0], sizes = [1, 128], strides = [1, 1]} : vector<8x128xf32> to vector<1x128xf32>
    %cst_29 = arith.constant dense<0.000000e+00> : vector<1x128xf32>
    %115 = tpu.matmul %113, %6, %cst_29 {dimension_numbers = #tpu.dot_dimension_numbers<[1], [0], [0], [1], [0, 0, 1, 1], [], []>} : vector<1x32xf32>, vector<32x128xf32>, vector<1x128xf32> -> vector<1x128xf32>
    %116 = arith.addf %114, %115 : vector<1x128xf32>
    %117 = arith.negf %116 : vector<1x128xf32>
    %118 = math.exp %117 : vector<1x128xf32>
    %cst_30 = arith.constant 1.000000e+00 : f32
    %119 = vector.broadcast %cst_30 : f32 to vector<1x128xf32>
    %120 = arith.addf %119, %118 : vector<1x128xf32>
    %121 = arith.divf %119, %120 : vector<1x128xf32>
    %122 = vector.extract_strided_slice %121 {offsets = [0, 0], sizes = [1, 32], strides = [1, 1]} : vector<1x128xf32> to vector<1x32xf32>
    %123 = vector.extract_strided_slice %121 {offsets = [0, 32], sizes = [1, 32], strides = [1, 1]} : vector<1x128xf32> to vector<1x32xf32>
    %124 = vector.extract_strided_slice %121 {offsets = [0, 64], sizes = [1, 32], strides = [1, 1]} : vector<1x128xf32> to vector<1x32xf32>
    %cst_31 = arith.constant 2.000000e+00 : f32
    %125 = vector.broadcast %cst_31 : f32 to vector<1x32xf32>
    %126 = arith.mulf %125, %124 : vector<1x32xf32>
    %cst_32 = arith.constant 1.000000e+00 : f32
    %127 = vector.broadcast %cst_32 : f32 to vector<1x32xf32>
    %128 = arith.subf %126, %127 : vector<1x32xf32>
    %129 = vector.extract_strided_slice %121 {offsets = [0, 96], sizes = [1, 32], strides = [1, 1]} : vector<1x128xf32> to vector<1x32xf32>
    %130 = arith.mulf %123, %111 : vector<1x32xf32>
    %131 = arith.mulf %122, %128 : vector<1x32xf32>
    %132 = arith.addf %130, %131 : vector<1x32xf32>
    %133 = math.tanh %132 : vector<1x32xf32>
    %134 = arith.mulf %129, %133 : vector<1x32xf32>
    %135 = vector.extract_strided_slice %5 {offsets = [6, 0], sizes = [1, 128], strides = [1, 1]} : vector<8x128xf32> to vector<1x128xf32>
    %cst_33 = arith.constant dense<0.000000e+00> : vector<1x128xf32>
    %136 = tpu.matmul %134, %6, %cst_33 {dimension_numbers = #tpu.dot_dimension_numbers<[1], [0], [0], [1], [0, 0, 1, 1], [], []>} : vector<1x32xf32>, vector<32x128xf32>, vector<1x128xf32> -> vector<1x128xf32>
    %137 = arith.addf %135, %136 : vector<1x128xf32>
    %138 = arith.negf %137 : vector<1x128xf32>
    %139 = math.exp %138 : vector<1x128xf32>
    %cst_34 = arith.constant 1.000000e+00 : f32
    %140 = vector.broadcast %cst_34 : f32 to vector<1x128xf32>
    %141 = arith.addf %140, %139 : vector<1x128xf32>
    %142 = arith.divf %140, %141 : vector<1x128xf32>
    %143 = vector.extract_strided_slice %142 {offsets = [0, 0], sizes = [1, 32], strides = [1, 1]} : vector<1x128xf32> to vector<1x32xf32>
    %144 = vector.extract_strided_slice %142 {offsets = [0, 32], sizes = [1, 32], strides = [1, 1]} : vector<1x128xf32> to vector<1x32xf32>
    %145 = vector.extract_strided_slice %142 {offsets = [0, 64], sizes = [1, 32], strides = [1, 1]} : vector<1x128xf32> to vector<1x32xf32>
    %cst_35 = arith.constant 2.000000e+00 : f32
    %146 = vector.broadcast %cst_35 : f32 to vector<1x32xf32>
    %147 = arith.mulf %146, %145 : vector<1x32xf32>
    %cst_36 = arith.constant 1.000000e+00 : f32
    %148 = vector.broadcast %cst_36 : f32 to vector<1x32xf32>
    %149 = arith.subf %147, %148 : vector<1x32xf32>
    %150 = vector.extract_strided_slice %142 {offsets = [0, 96], sizes = [1, 32], strides = [1, 1]} : vector<1x128xf32> to vector<1x32xf32>
    %151 = arith.mulf %144, %132 : vector<1x32xf32>
    %152 = arith.mulf %143, %149 : vector<1x32xf32>
    %153 = arith.addf %151, %152 : vector<1x32xf32>
    %154 = math.tanh %153 : vector<1x32xf32>
    %155 = arith.mulf %150, %154 : vector<1x32xf32>
    %156 = vector.extract_strided_slice %5 {offsets = [7, 0], sizes = [1, 128], strides = [1, 1]} : vector<8x128xf32> to vector<1x128xf32>
    %cst_37 = arith.constant dense<0.000000e+00> : vector<1x128xf32>
    %157 = tpu.matmul %155, %6, %cst_37 {dimension_numbers = #tpu.dot_dimension_numbers<[1], [0], [0], [1], [0, 0, 1, 1], [], []>} : vector<1x32xf32>, vector<32x128xf32>, vector<1x128xf32> -> vector<1x128xf32>
    %158 = arith.addf %156, %157 : vector<1x128xf32>
    %159 = arith.negf %158 : vector<1x128xf32>
    %160 = math.exp %159 : vector<1x128xf32>
    %cst_38 = arith.constant 1.000000e+00 : f32
    %161 = vector.broadcast %cst_38 : f32 to vector<1x128xf32>
    %162 = arith.addf %161, %160 : vector<1x128xf32>
    %163 = arith.divf %161, %162 : vector<1x128xf32>
    %164 = vector.extract_strided_slice %163 {offsets = [0, 0], sizes = [1, 32], strides = [1, 1]} : vector<1x128xf32> to vector<1x32xf32>
    %165 = vector.extract_strided_slice %163 {offsets = [0, 32], sizes = [1, 32], strides = [1, 1]} : vector<1x128xf32> to vector<1x32xf32>
    %166 = vector.extract_strided_slice %163 {offsets = [0, 64], sizes = [1, 32], strides = [1, 1]} : vector<1x128xf32> to vector<1x32xf32>
    %cst_39 = arith.constant 2.000000e+00 : f32
    %167 = vector.broadcast %cst_39 : f32 to vector<1x32xf32>
    %168 = arith.mulf %167, %166 : vector<1x32xf32>
    %cst_40 = arith.constant 1.000000e+00 : f32
    %169 = vector.broadcast %cst_40 : f32 to vector<1x32xf32>
    %170 = arith.subf %168, %169 : vector<1x32xf32>
    %171 = vector.extract_strided_slice %163 {offsets = [0, 96], sizes = [1, 32], strides = [1, 1]} : vector<1x128xf32> to vector<1x32xf32>
    %172 = arith.mulf %165, %153 : vector<1x32xf32>
    %173 = arith.mulf %164, %170 : vector<1x32xf32>
    %174 = arith.addf %172, %173 : vector<1x32xf32>
    %175 = math.tanh %174 : vector<1x32xf32>
    %176 = arith.mulf %171, %175 : vector<1x32xf32>
    %177 = tpu.concatenate %29, %50, %71, %92, %113, %134, %155, %176 in 0 : vector<1x32xf32>, vector<1x32xf32>, vector<1x32xf32>, vector<1x32xf32>, vector<1x32xf32>, vector<1x32xf32>, vector<1x32xf32>, vector<1x32xf32> -> vector<8x32xf32>
    %178 = tpu.concatenate %176, %155, %134, %113, %92, %71, %50, %29 in 0 : vector<1x32xf32>, vector<1x32xf32>, vector<1x32xf32>, vector<1x32xf32>, vector<1x32xf32>, vector<1x32xf32>, vector<1x32xf32>, vector<1x32xf32> -> vector<8x32xf32>
    %179 = tpu.iota {dimensions = array<i32: 1>} : vector<8x32xi32>
    %c16_i32 = arith.constant 16 : i32
    %180 = vector.broadcast %c16_i32 : i32 to vector<8x32xi32>
    %181 = arith.cmpi slt, %179, %180 : vector<8x32xi32>
    %182 = arith.select %181, %177, %178 : vector<8x32xi1>, vector<8x32xf32>
    %c0_41 = arith.constant 0 : index
    %c0_42 = arith.constant 0 : index
    %183 = vector.load %arg4[%c0_41, %c0_42] : memref<32x128xf32, #tpu.memory_space<vmem>>, vector<32x128xf32>
    %cst_43 = arith.constant dense<0.000000e+00> : vector<8x128xf32>
    %184 = tpu.matmul %182, %183, %cst_43 {dimension_numbers = #tpu.dot_dimension_numbers<[1], [0], [0], [1], [0, 0, 1, 1], [], []>} : vector<8x32xf32>, vector<32x128xf32>, vector<8x128xf32> -> vector<8x128xf32>
    %c0_44 = arith.constant 0 : index
    %c0_45 = arith.constant 0 : index
    %185 = vector.load %arg5[%c0_44, %c0_45] : memref<1x128xf32, #tpu.memory_space<vmem>>, vector<1x128xf32>
    %186 = vector.broadcast %185 : vector<1x128xf32> to vector<8x128xf32>
    %187 = arith.addf %184, %186 : vector<8x128xf32>
    %cst_46 = arith.constant dense<0xFF800000> : vector<128xf32>
    %188 = vector.multi_reduction <maximumf>, %187, %cst_46 [0] : vector<8x128xf32> to vector<128xf32>
    %189 = vector.shape_cast %188 : vector<128xf32> to vector<1x128xf32>
    %190 = vector.broadcast %189 : vector<1x128xf32> to vector<8x128xf32>
    %191 = arith.subf %187, %190 : vector<8x128xf32>
    %192 = math.exp %191 : vector<8x128xf32>
    %cst_47 = arith.constant dense<0.000000e+00> : vector<128xf32>
    %193 = vector.multi_reduction <add>, %192, %cst_47 [0] : vector<8x128xf32> to vector<128xf32>
    %194 = vector.shape_cast %193 : vector<128xf32> to vector<1x128xf32>
    %195 = tpu.reciprocal %194 {approx = true} : vector<1x128xf32> -> vector<1x128xf32>
    %196 = vector.broadcast %195 : vector<1x128xf32> to vector<8x128xf32>
    %197 = arith.mulf %192, %196 : vector<8x128xf32>
    %c0_48 = arith.constant 0 : index
    %c0_49 = arith.constant 0 : index
    %198 = vector.load %arg6[%c0_48, %c0_49] : memref<8x128xf32, #tpu.memory_space<vmem>>, vector<8x128xf32>
    tpu.vector_store %arg6[%c0_48, %c0_49], %197 {strides = array<i32>} : memref<8x128xf32, #tpu.memory_space<vmem>>, vector<8x128xf32>,
    return
  }
}

</mosaic_0001>

<llo_original>
// kernel: tpu_custom_call.1
$region0: #{tpu_custom_call.1}
  #allocation0 [shape = 'u32[]', space=smem, size = 0x4, offset = 0x4, fixed_abs, tag = 'smem constant byte address 0x4 - core index']
  #allocation1 [shape = 'u32[144,128]{1,0:T(1,128)}', space=vmem, size = 0x12000, scoped, tag = 'internal scratch']
  %s0 = inlined_call_operand.hbm [shape: f32[8,64], index: 0, kind: input, shape index: {}]
  %s1 = inlined_call_operand.hbm [shape: f32[64,128], index: 1, kind: input, shape index: {}]
  %s2 = inlined_call_operand.hbm [shape: f32[32,128], index: 2, kind: input, shape index: {}]
  %s3 = inlined_call_operand.vmem [shape: f32[1,128], index: 3, kind: input, shape index: {}]
  %s4 = inlined_call_operand.hbm [shape: f32[32,128], index: 4, kind: input, shape index: {}]
  %s5 = inlined_call_operand.vmem [shape: f32[1,128], index: 5, kind: input, shape index: {}]
  %s6 = inlined_call_operand.hbm [shape: f32[8,128], index: 6, kind: output, shape index: {}]
  %s7 = sld [smem:[#allocation0]]
  $region50: #{tpu_custom_call.1} parent=0
    _
  %s9 = ssub.s32 1, %s7
  %s10 = scalar_select 0, %s9, %s7
  $region1: #{tpu_custom_call.1} parent=0
    #allocation2 [shape = 'u8[4096]{0}', space=vmem, size = 0x1000, scoped, tag = 'input window, operand 0, single buffered']
    #allocation3 [shape = 's32[1]{0}', space=sflag, size = 0x4, scoped, tag = 'scoped memory for tpu_custom_call.1']
    #allocation4 [shape = 's32[1]{0}', space=sflag, size = 0x4, scoped, tag = 'scoped memory for tpu_custom_call.1']
    #allocation5 [shape = 'u8[32768]{0}', space=vmem, size = 0x8000, scoped, tag = 'input window, operand 1, single buffered']
    #allocation6 [shape = 's32[1]{0}', space=sflag, size = 0x4, scoped, tag = 'scoped memory for tpu_custom_call.1']
    #allocation7 [shape = 'u8[16384]{0}', space=vmem, size = 0x4000, scoped, tag = 'input window, operand 2, single buffered']
    #allocation8 [shape = 'u8[16384]{0}', space=vmem, size = 0x4000, scoped, tag = 'input window, operand 4, single buffered']
    #allocation9 [shape = 's32[1]{0}', space=sflag, size = 0x4, scoped, tag = 'scoped memory for tpu_custom_call.1']
    #allocation10 [shape = 'u8[4096]{0}', space=vmem, size = 0x1000, scoped, tag = 'output window, operand 0, single buffered']
    %11 = vsyncpa [#allocation3], 0
    %12 = vsyncpa [#allocation6], 0
    %13 = vsyncpa [#allocation9], 0
    %14 = vsyncpa [#allocation4], 0
    // Predicated region
    $region2: #{tpu_custom_call.1} parent=1 // pred_check
      _
    $region3: #{tpu_custom_call.1} parent=1 // pred_check_branch
      %16 = sbr.rel (0) target = $region5
    $region4: #{tpu_custom_call.1} parent=1 // pred_region
      %s18 = ssub.s32 128, 128
      %19 = vsyncadd [#allocation3], %s18
      %s21 = sshll.u32 [#allocation2], 4
      %s22 = int_to_ptr.vmem [resolvable:$true] %s21
      %24 = dma.hbm_to_vmem [thread:$0]  %s0, 128, %s22, [#allocation3]
    $region5: #{tpu_custom_call.1} parent=1 // pred_fallthru
      _
    // Predicated region
    $region6: #{tpu_custom_call.1} parent=1 // pred_check
      _
    $region7: #{tpu_custom_call.1} parent=1 // pred_check_branch
      %26 = sbr.rel (0) target = $region9
    $region8: #{tpu_custom_call.1} parent=1 // pred_region
      %s28 = ssub.s32 1024, 1024
      %29 = vsyncadd [#allocation6], %s28
      %s30 = sshll.u32 [#allocation5], 4
      %s31 = int_to_ptr.vmem [resolvable:$true] %s30
      %36 = dma.hbm_to_vmem [thread:$0]  %s1, 1024, %s31, [#allocation6], 128, 128, 8
    $region9: #{tpu_custom_call.1} parent=1 // pred_fallthru
      _
    // Predicated region
    $region10: #{tpu_custom_call.1} parent=1 // pred_check
      _
    $region11: #{tpu_custom_call.1} parent=1 // pred_check_branch
      %38 = sbr.rel (0) target = $region13
    $region12: #{tpu_custom_call.1} parent=1 // pred_region
      %s40 = ssub.s32 512, 512
      %41 = vsyncadd [#allocation6], %s40
      %s42 = sshll.u32 [#allocation7], 4
      %s43 = int_to_ptr.vmem [resolvable:$true] %s42
      %48 = dma.hbm_to_vmem [thread:$0]  %s2, 512, %s43, [#allocation6], 128, 128, 8
    $region13: #{tpu_custom_call.1} parent=1 // pred_fallthru
      _
    // Predicated region
    $region14: #{tpu_custom_call.1} parent=1 // pred_check
      _
    $region15: #{tpu_custom_call.1} parent=1 // pred_check_branch
      %50 = sbr.rel (0) target = $region17
    $region16: #{tpu_custom_call.1} parent=1 // pred_region
      _
    $region17: #{tpu_custom_call.1} parent=1 // pred_fallthru
      _
    // Predicated region
    $region18: #{tpu_custom_call.1} parent=1 // pred_check
      _
    $region19: #{tpu_custom_call.1} parent=1 // pred_check_branch
      %52 = sbr.rel (0) target = $region21
    $region20: #{tpu_custom_call.1} parent=1 // pred_region
      %s54 = ssub.s32 512, 512
      %55 = vsyncadd [#allocation9], %s54
      %s56 = sshll.u32 [#allocation8], 4
      %s57 = int_to_ptr.vmem [resolvable:$true] %s56
      %62 = dma.hbm_to_vmem [thread:$0]  %s4, 512, %s57, [#allocation9], 128, 128, 8
    $region21: #{tpu_custom_call.1} parent=1 // pred_fallthru
      _
    // Predicated region
    $region22: #{tpu_custom_call.1} parent=1 // pred_check
      _
    $region23: #{tpu_custom_call.1} parent=1 // pred_check_branch
      %64 = sbr.rel (0) target = $region25
    $region24: #{tpu_custom_call.1} parent=1 // pred_region
      _
    $region25: #{tpu_custom_call.1} parent=1 // pred_fallthru
      _
    // Predicated region
    $region26: #{tpu_custom_call.1} parent=1 // pred_check
      _
    $region27: #{tpu_custom_call.1} parent=1 // pred_check_branch
      %66 = sbr.rel (0) target = $region29
    $region28: #{tpu_custom_call.1} parent=1 // pred_region
      %67 = dma.done [#allocation3], 128
    $region29: #{tpu_custom_call.1} parent=1 // pred_fallthru
      _
    // Predicated region
    $region30: #{tpu_custom_call.1} parent=1 // pred_check
      _
    $region31: #{tpu_custom_call.1} parent=1 // pred_check_branch
      %69 = sbr.rel (0) target = $region33
    $region32: #{tpu_custom_call.1} parent=1 // pred_region
      %70 = dma.done [#allocation6], 1024
    $region33: #{tpu_custom_call.1} parent=1 // pred_fallthru
      _
    // Predicated region
    $region34: #{tpu_custom_call.1} parent=1 // pred_check
      _
    $region35: #{tpu_custom_call.1} parent=1 // pred_check_branch
      %72 = sbr.rel (0) target = $region37
    $region36: #{tpu_custom_call.1} parent=1 // pred_region
      %73 = dma.done [#allocation6], 512
    $region37: #{tpu_custom_call.1} parent=1 // pred_fallthru
      _
    // Predicated region
    $region38: #{tpu_custom_call.1} parent=1 // pred_check
      _
    $region39: #{tpu_custom_call.1} parent=1 // pred_check_branch
      %75 = sbr.rel (0) target = $region41
    $region40: #{tpu_custom_call.1} parent=1 // pred_region
      %76 = dma.done [#allocation9], 512
    $region41: #{tpu_custom_call.1} parent=1 // pred_fallthru
      _
    %v77 = vld [vmem:[#allocation2] sm:$0xff]
    %v78 = vld [vmem:[#allocation5] sm:$0xff]
    %v79 = vld [vmem:[#allocation5 + $0x8] sm:$0xff]
    %v80 = vld [vmem:[#allocation5 + $0x10] sm:$0xff]
    %v81 = vld [vmem:[#allocation5 + $0x18] sm:$0xff]
    %v82 = vld [vmem:[#allocation5 + $0x20] sm:$0xff]
    %v83 = vld [vmem:[#allocation5 + $0x28] sm:$0xff]
    %v84 = vld [vmem:[#allocation5 + $0x30] sm:$0xff]
    %v85 = vld [vmem:[#allocation5 + $0x38] sm:$0xff]
    %v86 = vld [vmem:[%s3] sm:$0x1]
    %v88 = vlaneseq
    %v89 = vshrl.u32 %v88, 7
    %v90 = vsub.s32 0, %v89
    %v91 = vrot.slane %v86, %v90
    %vm93 = vcmask 523264
    %v95 = vsel %vm93, %v77, 0
    %97 = vmatprep.subr.mxu0 0.0
    %98 = vmatpush1.msra.mxu0 0.0
    %99 = vmatprep.subr.mxu0 0.0
    %100 = vmatpush1.msra.mxu0 0.0
    %101 = vmatprep.subr.mxu0 0.0
    %102 = vmatpush1.msra.mxu0 0.0
    %103 = vmatprep.subr.mxu0 0.0
    %104 = vmatpush1.msra.mxu0 0.0
    %105 = vmatprep.subr.mxu0 0.0
    %106 = vmatpush1.msra.mxu0 0.0
    %107 = vmatprep.subr.mxu0 0.0
    %108 = vmatpush1.msra.mxu0 0.0
    %109 = vmatprep.subr.mxu0 0.0
    %110 = vmatpush1.msra.mxu0 0.0
    %111 = vmatprep.subr.mxu0 0.0
    %112 = vmatpush1.msra.mxu0 0.0
    %113 = vmatprep.subr.mxu0 0.0
    %114 = vmatpush1.msra.mxu0 %v85
    %115 = vmatprep.subr.mxu0 0.0
    %116 = vmatpush1.msra.mxu0 %v84
    %117 = vmatprep.subr.mxu0 0.0
    %118 = vmatpush1.msra.mxu0 %v83
    %119 = vmatprep.subr.mxu0 0.0
    %120 = vmatpush1.msra.mxu0 %v82
    %121 = vmatprep.subr.mxu0 0.0
    %122 = vmatpush1.msra.mxu0 %v81
    %123 = vmatprep.subr.mxu0 0.0
    %124 = vmatpush1.msra.mxu0 %v80
    %125 = vmatprep.subr.mxu0 0.0
    %126 = vmatpush1.msra.mxu0 %v79
    %127 = vmatprep.subr.mxu0 0.0
    %128 = vmatpush1.msra.mxu0 %v78
    %129 = vmatprep.subr.mxu0 0.0
    %130 = vmatpush2.msra.mxu0 0.0
    %131 = vmatprep.subr.mxu0 0.0
    %132 = vmatpush2.msra.mxu0 0.0
    %133 = vmatprep.subr.mxu0 0.0
    %134 = vmatpush2.msra.mxu0 0.0
    %135 = vmatprep.subr.mxu0 0.0
    %136 = vmatpush2.msra.mxu0 0.0
    %137 = vmatprep.subr.mxu0 0.0
    %138 = vmatpush2.msra.mxu0 0.0
    %139 = vmatprep.subr.mxu0 0.0
    %140 = vmatpush2.msra.mxu0 0.0
    %141 = vmatprep.subr.mxu0 0.0
    %142 = vmatpush2.msra.mxu0 0.0
    %143 = vmatprep.subr.mxu0 0.0
    %144 = vmatpush2.msra.mxu0 0.0
    %145 = vmatprep.subr.mxu0 0.0
    %146 = vmatpush2.msra.mxu0 0.0
    %147 = vmatprep.subr.mxu0 0.0
    %148 = vmatpush2.msra.mxu0 0.0
    %149 = vmatprep.subr.mxu0 0.0
    %150 = vmatpush2.msra.mxu0 0.0
    %151 = vmatprep.subr.mxu0 0.0
    %152 = vmatpush2.msra.mxu0 0.0
    %153 = vmatprep.subr.mxu0 0.0
    %154 = vmatpush2.msra.mxu0 0.0
    %155 = vmatprep.subr.mxu0 0.0
    %156 = vmatpush2.msra.mxu0 0.0
    %157 = vmatprep.subr.mxu0 0.0
    %158 = vmatpush2.msra.mxu0 0.0
    %159 = vmatprep.subr.mxu0 0.0
    %160 = vmatpush2.msra.mxu0 0.0
    %161 = vmatprep.mubr.f32.mxu0 0.0
    %162 = vmatmul.mubr.f32.gmra.mxu0 %v95
    %v163 = vpop.f32.mrf.mxu0
    %v164 = vadd.f32 %v91, %v163
    %v165 = vpop.f32.mrf.mxu0
    %166 = vdwg.mxu0
    %v167 = vld [vmem:[#allocation7] sm:$0xff]
    %v168 = vld [vmem:[#allocation7 + $0x8] sm:$0xff]
    %v169 = vld [vmem:[#allocation7 + $0x10] sm:$0xff]
    %v170 = vld [vmem:[#allocation7 + $0x18] sm:$0xff]
    %vm171 = vcmask 261120
    %v173 = vsel %vm171, 0.0, 0
    %175 = vmatprep.subr.mxu0 0.0
    %176 = vmatpush1.msra.mxu0 0.0
    %177 = vmatprep.subr.mxu0 0.0
    %178 = vmatpush1.msra.mxu0 0.0
    %179 = vmatprep.subr.mxu0 0.0
    %180 = vmatpush1.msra.mxu0 0.0
    %181 = vmatprep.subr.mxu0 0.0
    %182 = vmatpush1.msra.mxu0 0.0
    %183 = vmatprep.subr.mxu0 0.0
    %184 = vmatpush1.msra.mxu0 0.0
    %185 = vmatprep.subr.mxu0 0.0
    %186 = vmatpush1.msra.mxu0 0.0
    %187 = vmatprep.subr.mxu0 0.0
    %188 = vmatpush1.msra.mxu0 0.0
    %189 = vmatprep.subr.mxu0 0.0
    %190 = vmatpush1.msra.mxu0 0.0
    %191 = vmatprep.subr.mxu0 0.0
    %192 = vmatpush1.msra.mxu0 0.0
    %193 = vmatprep.subr.mxu0 0.0
    %194 = vmatpush1.msra.mxu0 0.0
    %195 = vmatprep.subr.mxu0 0.0
    %196 = vmatpush1.msra.mxu0 0.0
    %197 = vmatprep.subr.mxu0 0.0
    %198 = vmatpush1.msra.mxu0 0.0
    %199 = vmatprep.subr.mxu0 0.0
    %200 = vmatpush1.msra.mxu0 %v170
    %201 = vmatprep.subr.mxu0 0.0
    %202 = vmatpush1.msra.mxu0 %v169
    %203 = vmatprep.subr.mxu0 0.0
    %204 = vmatpush1.msra.mxu0 %v168
    %205 = vmatprep.subr.mxu0 0.0
    %206 = vmatpush1.msra.mxu0 %v167
    %207 = vmatprep.subr.mxu0 0.0
    %208 = vmatpush2.msra.mxu0 0.0
    %209 = vmatprep.subr.mxu0 0.0
    %210 = vmatpush2.msra.mxu0 0.0
    %211 = vmatprep.subr.mxu0 0.0
    %212 = vmatpush2.msra.mxu0 0.0
    %213 = vmatprep.subr.mxu0 0.0
    %214 = vmatpush2.msra.mxu0 0.0
    %215 = vmatprep.subr.mxu0 0.0
    %216 = vmatpush2.msra.mxu0 0.0
    %217 = vmatprep.subr.mxu0 0.0
    %218 = vmatpush2.msra.mxu0 0.0
    %219 = vmatprep.subr.mxu0 0.0
    %220 = vmatpush2.msra.mxu0 0.0
    %221 = vmatprep.subr.mxu0 0.0
    %222 = vmatpush2.msra.mxu0 0.0
    %223 = vmatprep.subr.mxu0 0.0
    %224 = vmatpush2.msra.mxu0 0.0
    %225 = vmatprep.subr.mxu0 0.0
    %226 = vmatpush2.msra.mxu0 0.0
    %227 = vmatprep.subr.mxu0 0.0
    %228 = vmatpush2.msra.mxu0 0.0
    %229 = vmatprep.subr.mxu0 0.0
    %230 = vmatpush2.msra.mxu0 0.0
    %231 = vmatprep.subr.mxu0 0.0
    %232 = vmatpush2.msra.mxu0 0.0
    %233 = vmatprep.subr.mxu0 0.0
    %234 = vmatpush2.msra.mxu0 0.0
    %235 = vmatprep.subr.mxu0 0.0
    %236 = vmatpush2.msra.mxu0 0.0
    %237 = vmatprep.subr.mxu0 0.0
    %238 = vmatpush2.msra.mxu0 0.0
    %239 = vmatprep.mubr.f32.mxu0 0.0
    %240 = vmatmul.mubr.f32.gmra.mxu0 %v173
    %v241 = vpop.f32.mrf.mxu0
    %v242 = vadd.f32 0.0, %v241
    %v243 = vpop.f32.mrf.mxu0
    %244 = vdwg.mxu0
    %v245 = vadd.f32 %v164, %v242
    %v246 = vxor.u32 %v245, 2147483648
    %v247 = vmul.f32 %v246, 1.442695
    %v248 = vpow.pop %v247
    %v249 = vadd.f32 %v248, 1.0
    %v250 = vrcp.pop %v249
    %v251 = vmul.f32 1.0, %v250
    %v252 = vmul.f32 %v251, 2.0
    %v253 = vsub.f32 %v252, 1.0
    %v254 = vmul.f32 %v251, 0.0
    %256 = vrot.lane.b32.xlu0 %v253, 64
    %v257 = vpop.permute.xlu0 %256
    %v259 = vmul.f32 %v251, %v257
    %261 = vrot.lane.b32.xlu0 %v259, 32
    %v262 = vpop.permute.xlu0 %261
    %v264 = vadd.f32 %v254, %v262
    %v265 = vtanh.pop %v264
    %267 = vrot.lane.b32.xlu0 %v265, 64
    %v268 = vpop.permute.xlu0 %267
    %v270 = vmul.f32 %v251, %v268
    %272 = vrot.lane.b32.xlu0 %v270, 32
    %v273 = vpop.permute.xlu0 %272
    %v274 = vsel %vm171, %v273, 0
    %276 = vmatprep.subr.mxu0 0.0
    %277 = vmatpush1.msra.mxu0 0.0
    %278 = vmatprep.subr.mxu0 0.0
    %279 = vmatpush1.msra.mxu0 0.0
    %280 = vmatprep.subr.mxu0 0.0
    %281 = vmatpush1.msra.mxu0 0.0
    %282 = vmatprep.subr.mxu0 0.0
    %283 = vmatpush1.msra.mxu0 0.0
    %284 = vmatprep.subr.mxu0 0.0
    %285 = vmatpush1.msra.mxu0 0.0
    %286 = vmatprep.subr.mxu0 0.0
    %287 = vmatpush1.msra.mxu0 0.0
    %288 = vmatprep.subr.mxu0 0.0
    %289 = vmatpush1.msra.mxu0 0.0
    %290 = vmatprep.subr.mxu0 0.0
    %291 = vmatpush1.msra.mxu0 0.0
    %292 = vmatprep.subr.mxu0 0.0
    %293 = vmatpush1.msra.mxu0 0.0
    %294 = vmatprep.subr.mxu0 0.0
    %295 = vmatpush1.msra.mxu0 0.0
    %296 = vmatprep.subr.mxu0 0.0
    %297 = vmatpush1.msra.mxu0 0.0
    %298 = vmatprep.subr.mxu0 0.0
    %299 = vmatpush1.msra.mxu0 0.0
    %300 = vmatprep.subr.mxu0 0.0
    %301 = vmatpush1.msra.mxu0 %v170
    %302 = vmatprep.subr.mxu0 0.0
    %303 = vmatpush1.msra.mxu0 %v169
    %304 = vmatprep.subr.mxu0 0.0
    %305 = vmatpush1.msra.mxu0 %v168
    %306 = vmatprep.subr.mxu0 0.0
    %307 = vmatpush1.msra.mxu0 %v167
    %308 = vmatprep.subr.mxu0 0.0
    %309 = vmatpush2.msra.mxu0 0.0
    %310 = vmatprep.subr.mxu0 0.0
    %311 = vmatpush2.msra.mxu0 0.0
    %312 = vmatprep.subr.mxu0 0.0
    %313 = vmatpush2.msra.mxu0 0.0
    %314 = vmatprep.subr.mxu0 0.0
    %315 = vmatpush2.msra.mxu0 0.0
    %316 = vmatprep.subr.mxu0 0.0
    %317 = vmatpush2.msra.mxu0 0.0
    %318 = vmatprep.subr.mxu0 0.0
    %319 = vmatpush2.msra.mxu0 0.0
    %320 = vmatprep.subr.mxu0 0.0
    %321 = vmatpush2.msra.mxu0 0.0
    %322 = vmatprep.subr.mxu0 0.0
    %323 = vmatpush2.msra.mxu0 0.0
    %324 = vmatprep.subr.mxu0 0.0
    %325 = vmatpush2.msra.mxu0 0.0
    %326 = vmatprep.subr.mxu0 0.0
    %327 = vmatpush2.msra.mxu0 0.0
    %328 = vmatprep.subr.mxu0 0.0
    %329 = vmatpush2.msra.mxu0 0.0
    %330 = vmatprep.subr.mxu0 0.0
    %331 = vmatpush2.msra.mxu0 0.0
    %332 = vmatprep.subr.mxu0 0.0
    %333 = vmatpush2.msra.mxu0 0.0
    %334 = vmatprep.subr.mxu0 0.0
    %335 = vmatpush2.msra.mxu0 0.0
    %336 = vmatprep.subr.mxu0 0.0
    %337 = vmatpush2.msra.mxu0 0.0
    %338 = vmatprep.subr.mxu0 0.0
    %339 = vmatpush2.msra.mxu0 0.0
    %340 = vmatprep.mubr.f32.mxu0 0.0
    %341 = vmatmul.mubr.f32.gmra.mxu0 %v274
    %v342 = vpop.f32.mrf.mxu0
    %v343 = vadd.f32 0.0, %v342
    %v344 = vpop.f32.mrf.mxu0
    %345 = vdwg.mxu0
    %v347 = vrot.slane %v343, 7
    %v349 = vadd.f32 %v164, %v347
    %v350 = vxor.u32 %v349, 2147483648
    %v351 = vmul.f32 %v350, 1.442695
    %v352 = vpow.pop %v351
    %v353 = vadd.f32 %v352, 1.0
    %v354 = vrcp.pop %v353
    %v355 = vmul.f32 1.0, %v354
    %v356 = vmul.f32 %v355, 2.0
    %v357 = vsub.f32 %v356, 1.0
    %v359 = vrot.slane %v264, 7
    %v361 = vmul.f32 %v355, %v359
    %363 = vrot.lane.b32.xlu0 %v357, 64
    %v364 = vpop.permute.xlu0 %363
    %v366 = vmul.f32 %v355, %v364
    %368 = vrot.lane.b32.xlu0 %v366, 32
    %v369 = vpop.permute.xlu0 %368
    %v371 = vadd.f32 %v361, %v369
    %v372 = vtanh.pop %v371
    %374 = vrot.lane.b32.xlu0 %v372, 64
    %v375 = vpop.permute.xlu0 %374
    %v377 = vmul.f32 %v355, %v375
    %v379 = vrot.slane %v377, 1
    %380 = vrot.lane.b32.xlu0 %v379, 32
    %v381 = vpop.permute.xlu0 %380
    %v382 = vsel %vm171, %v381, 0
    %384 = vmatprep.subr.mxu0 0.0
    %385 = vmatpush1.msra.mxu0 0.0
    %386 = vmatprep.subr.mxu0 0.0
    %387 = vmatpush1.msra.mxu0 0.0
    %388 = vmatprep.subr.mxu0 0.0
    %389 = vmatpush1.msra.mxu0 0.0
    %390 = vmatprep.subr.mxu0 0.0
    %391 = vmatpush1.msra.mxu0 0.0
    %392 = vmatprep.subr.mxu0 0.0
    %393 = vmatpush1.msra.mxu0 0.0
    %394 = vmatprep.subr.mxu0 0.0
    %395 = vmatpush1.msra.mxu0 0.0
    %396 = vmatprep.subr.mxu0 0.0
    %397 = vmatpush1.msra.mxu0 0.0
    %398 = vmatprep.subr.mxu0 0.0
    %399 = vmatpush1.msra.mxu0 0.0
    %400 = vmatprep.subr.mxu0 0.0
    %401 = vmatpush1.msra.mxu0 0.0
    %402 = vmatprep.subr.mxu0 0.0
    %403 = vmatpush1.msra.mxu0 0.0
    %404 = vmatprep.subr.mxu0 0.0
    %405 = vmatpush1.msra.mxu0 0.0
    %406 = vmatprep.subr.mxu0 0.0
    %407 = vmatpush1.msra.mxu0 0.0
    %408 = vmatprep.subr.mxu0 0.0
    %409 = vmatpush1.msra.mxu0 %v170
    %410 = vmatprep.subr.mxu0 0.0
    %411 = vmatpush1.msra.mxu0 %v169
    %412 = vmatprep.subr.mxu0 0.0
    %413 = vmatpush1.msra.mxu0 %v168
    %414 = vmatprep.subr.mxu0 0.0
    %415 = vmatpush1.msra.mxu0 %v167
    %416 = vmatprep.subr.mxu0 0.0
    %417 = vmatpush2.msra.mxu0 0.0
    %418 = vmatprep.subr.mxu0 0.0
    %419 = vmatpush2.msra.mxu0 0.0
    %420 = vmatprep.subr.mxu0 0.0
    %421 = vmatpush2.msra.mxu0 0.0
    %422 = vmatprep.subr.mxu0 0.0
    %423 = vmatpush2.msra.mxu0 0.0
    %424 = vmatprep.subr.mxu0 0.0
    %425 = vmatpush2.msra.mxu0 0.0
    %426 = vmatprep.subr.mxu0 0.0
    %427 = vmatpush2.msra.mxu0 0.0
    %428 = vmatprep.subr.mxu0 0.0
    %429 = vmatpush2.msra.mxu0 0.0
    %430 = vmatprep.subr.mxu0 0.0
    %431 = vmatpush2.msra.mxu0 0.0
    %432 = vmatprep.subr.mxu0 0.0
    %433 = vmatpush2.msra.mxu0 0.0
    %434 = vmatprep.subr.mxu0 0.0
    %435 = vmatpush2.msra.mxu0 0.0
    %436 = vmatprep.subr.mxu0 0.0
    %437 = vmatpush2.msra.mxu0 0.0
    %438 = vmatprep.subr.mxu0 0.0
    %439 = vmatpush2.msra.mxu0 0.0
    %440 = vmatprep.subr.mxu0 0.0
    %441 = vmatpush2.msra.mxu0 0.0
    %442 = vmatprep.subr.mxu0 0.0
    %443 = vmatpush2.msra.mxu0 0.0
    %444 = vmatprep.subr.mxu0 0.0
    %445 = vmatpush2.msra.mxu0 0.0
    %446 = vmatprep.subr.mxu0 0.0
    %447 = vmatpush2.msra.mxu0 0.0
    %448 = vmatprep.mubr.f32.mxu0 0.0
    %449 = vmatmul.mubr.f32.gmra.mxu0 %v382
    %v450 = vpop.f32.mrf.mxu0
    %v451 = vadd.f32 0.0, %v450
    %v452 = vpop.f32.mrf.mxu0
    %453 = vdwg.mxu0
    %v455 = vrot.slane %v451, 6
    %v457 = vadd.f32 %v164, %v455
    %v458 = vxor.u32 %v457, 2147483648
    %v459 = vmul.f32 %v458, 1.442695
    %v460 = vpow.pop %v459
    %v461 = vadd.f32 %v460, 1.0
    %v462 = vrcp.pop %v461
    %v463 = vmul.f32 1.0, %v462
    %v464 = vmul.f32 %v463, 2.0
    %v465 = vsub.f32 %v464, 1.0
    %v467 = vrot.slane %v371, 7
    %v469 = vmul.f32 %v463, %v467
    %471 = vrot.lane.b32.xlu0 %v465, 64
    %v472 = vpop.permute.xlu0 %471
    %v474 = vmul.f32 %v463, %v472
    %476 = vrot.lane.b32.xlu0 %v474, 32
    %v477 = vpop.permute.xlu0 %476
    %v479 = vadd.f32 %v469, %v477
    %v480 = vtanh.pop %v479
    %482 = vrot.lane.b32.xlu0 %v480, 64
    %v483 = vpop.permute.xlu0 %482
    %v485 = vmul.f32 %v463, %v483
    %v487 = vrot.slane %v485, 2
    %488 = vrot.lane.b32.xlu0 %v487, 32
    %v489 = vpop.permute.xlu0 %488
    %v490 = vsel %vm171, %v489, 0
    %492 = vmatprep.subr.mxu0 0.0
    %493 = vmatpush1.msra.mxu0 0.0
    %494 = vmatprep.subr.mxu0 0.0
    %495 = vmatpush1.msra.mxu0 0.0
    %496 = vmatprep.subr.mxu0 0.0
    %497 = vmatpush1.msra.mxu0 0.0
    %498 = vmatprep.subr.mxu0 0.0
    %499 = vmatpush1.msra.mxu0 0.0
    %500 = vmatprep.subr.mxu0 0.0
    %501 = vmatpush1.msra.mxu0 0.0
    %502 = vmatprep.subr.mxu0 0.0
    %503 = vmatpush1.msra.mxu0 0.0
    %504 = vmatprep.subr.mxu0 0.0
    %505 = vmatpush1.msra.mxu0 0.0
    %506 = vmatprep.subr.mxu0 0.0
    %507 = vmatpush1.msra.mxu0 0.0
    %508 = vmatprep.subr.mxu0 0.0
    %509 = vmatpush1.msra.mxu0 0.0
    %510 = vmatprep.subr.mxu0 0.0
    %511 = vmatpush1.msra.mxu0 0.0
    %512 = vmatprep.subr.mxu0 0.0
    %513 = vmatpush1.msra.mxu0 0.0
    %514 = vmatprep.subr.mxu0 0.0
    %515 = vmatpush1.msra.mxu0 0.0
    %516 = vmatprep.subr.mxu0 0.0
    %517 = vmatpush1.msra.mxu0 %v170
    %518 = vmatprep.subr.mxu0 0.0
    %519 = vmatpush1.msra.mxu0 %v169
    %520 = vmatprep.subr.mxu0 0.0
    %521 = vmatpush1.msra.mxu0 %v168
    %522 = vmatprep.subr.mxu0 0.0
    %523 = vmatpush1.msra.mxu0 %v167
    %524 = vmatprep.subr.mxu0 0.0
    %525 = vmatpush2.msra.mxu0 0.0
    %526 = vmatprep.subr.mxu0 0.0
    %527 = vmatpush2.msra.mxu0 0.0
    %528 = vmatprep.subr.mxu0 0.0
    %529 = vmatpush2.msra.mxu0 0.0
    %530 = vmatprep.subr.mxu0 0.0
    %531 = vmatpush2.msra.mxu0 0.0
    %532 = vmatprep.subr.mxu0 0.0
    %533 = vmatpush2.msra.mxu0 0.0
    %534 = vmatprep.subr.mxu0 0.0
    %535 = vmatpush2.msra.mxu0 0.0
    %536 = vmatprep.subr.mxu0 0.0
    %537 = vmatpush2.msra.mxu0 0.0
    %538 = vmatprep.subr.mxu0 0.0
    %539 = vmatpush2.msra.mxu0 0.0
    %540 = vmatprep.subr.mxu0 0.0
    %541 = vmatpush2.msra.mxu0 0.0
    %542 = vmatprep.subr.mxu0 0.0
    %543 = vmatpush2.msra.mxu0 0.0
    %544 = vmatprep.subr.mxu0 0.0
    %545 = vmatpush2.msra.mxu0 0.0
    %546 = vmatprep.subr.mxu0 0.0
    %547 = vmatpush2.msra.mxu0 0.0
    %548 = vmatprep.subr.mxu0 0.0
    %549 = vmatpush2.msra.mxu0 0.0
    %550 = vmatprep.subr.mxu0 0.0
    %551 = vmatpush2.msra.mxu0 0.0
    %552 = vmatprep.subr.mxu0 0.0
    %553 = vmatpush2.msra.mxu0 0.0
    %554 = vmatprep.subr.mxu0 0.0
    %555 = vmatpush2.msra.mxu0 0.0
    %556 = vmatprep.mubr.f32.mxu0 0.0
    %557 = vmatmul.mubr.f32.gmra.mxu0 %v490
    %v558 = vpop.f32.mrf.mxu0
    %v559 = vadd.f32 0.0, %v558
    %v560 = vpop.f32.mrf.mxu0
    %561 = vdwg.mxu0
    %v563 = vrot.slane %v559, 5
    %v565 = vadd.f32 %v164, %v563
    %v566 = vxor.u32 %v565, 2147483648
    %v567 = vmul.f32 %v566, 1.442695
    %v568 = vpow.pop %v567
    %v569 = vadd.f32 %v568, 1.0
    %v570 = vrcp.pop %v569
    %v571 = vmul.f32 1.0, %v570
    %v572 = vmul.f32 %v571, 2.0
    %v573 = vsub.f32 %v572, 1.0
    %v575 = vrot.slane %v479, 7
    %v577 = vmul.f32 %v571, %v575
    %579 = vrot.lane.b32.xlu0 %v573, 64
    %v580 = vpop.permute.xlu0 %579
    %v582 = vmul.f32 %v571, %v580
    %584 = vrot.lane.b32.xlu0 %v582, 32
    %v585 = vpop.permute.xlu0 %584
    %v587 = vadd.f32 %v577, %v585
    %v588 = vtanh.pop %v587
    %590 = vrot.lane.b32.xlu0 %v588, 64
    %v591 = vpop.permute.xlu0 %590
    %v593 = vmul.f32 %v571, %v591
    %v595 = vrot.slane %v593, 3
    %596 = vrot.lane.b32.xlu0 %v595, 32
    %v597 = vpop.permute.xlu0 %596
    %v598 = vsel %vm171, %v597, 0
    %600 = vmatprep.subr.mxu0 0.0
    %601 = vmatpush1.msra.mxu0 0.0
    %602 = vmatprep.subr.mxu0 0.0
    %603 = vmatpush1.msra.mxu0 0.0
    %604 = vmatprep.subr.mxu0 0.0
    %605 = vmatpush1.msra.mxu0 0.0
    %606 = vmatprep.subr.mxu0 0.0
    %607 = vmatpush1.msra.mxu0 0.0
    %608 = vmatprep.subr.mxu0 0.0
    %609 = vmatpush1.msra.mxu0 0.0
    %610 = vmatprep.subr.mxu0 0.0
    %611 = vmatpush1.msra.mxu0 0.0
    %612 = vmatprep.subr.mxu0 0.0
    %613 = vmatpush1.msra.mxu0 0.0
    %614 = vmatprep.subr.mxu0 0.0
    %615 = vmatpush1.msra.mxu0 0.0
    %616 = vmatprep.subr.mxu0 0.0
    %617 = vmatpush1.msra.mxu0 0.0
    %618 = vmatprep.subr.mxu0 0.0
    %619 = vmatpush1.msra.mxu0 0.0
    %620 = vmatprep.subr.mxu0 0.0
    %621 = vmatpush1.msra.mxu0 0.0
    %622 = vmatprep.subr.mxu0 0.0
    %623 = vmatpush1.msra.mxu0 0.0
    %624 = vmatprep.subr.mxu0 0.0
    %625 = vmatpush1.msra.mxu0 %v170
    %626 = vmatprep.subr.mxu0 0.0
    %627 = vmatpush1.msra.mxu0 %v169
    %628 = vmatprep.subr.mxu0 0.0
    %629 = vmatpush1.msra.mxu0 %v168
    %630 = vmatprep.subr.mxu0 0.0
    %631 = vmatpush1.msra.mxu0 %v167
    %632 = vmatprep.subr.mxu0 0.0
    %633 = vmatpush2.msra.mxu0 0.0
    %634 = vmatprep.subr.mxu0 0.0
    %635 = vmatpush2.msra.mxu0 0.0
    %636 = vmatprep.subr.mxu0 0.0
    %637 = vmatpush2.msra.mxu0 0.0
    %638 = vmatprep.subr.mxu0 0.0
    %639 = vmatpush2.msra.mxu0 0.0
    %640 = vmatprep.subr.mxu0 0.0
    %641 = vmatpush2.msra.mxu0 0.0
    %642 = vmatprep.subr.mxu0 0.0
    %643 = vmatpush2.msra.mxu0 0.0
    %644 = vmatprep.subr.mxu0 0.0
    %645 = vmatpush2.msra.mxu0 0.0
    %646 = vmatprep.subr.mxu0 0.0
    %647 = vmatpush2.msra.mxu0 0.0
    %648 = vmatprep.subr.mxu0 0.0
    %649 = vmatpush2.msra.mxu0 0.0
    %650 = vmatprep.subr.mxu0 0.0
    %651 = vmatpush2.msra.mxu0 0.0
    %652 = vmatprep.subr.mxu0 0.0
    %653 = vmatpush2.msra.mxu0 0.0
    %654 = vmatprep.subr.mxu0 0.0
    %655 = vmatpush2.msra.mxu0 0.0
    %656 = vmatprep.subr.mxu0 0.0
    %657 = vmatpush2.msra.mxu0 0.0
    %658 = vmatprep.subr.mxu0 0.0
    %659 = vmatpush2.msra.mxu0 0.0
    %660 = vmatprep.subr.mxu0 0.0
    %661 = vmatpush2.msra.mxu0 0.0
    %662 = vmatprep.subr.mxu0 0.0
    %663 = vmatpush2.msra.mxu0 0.0
    %664 = vmatprep.mubr.f32.mxu0 0.0
    %665 = vmatmul.mubr.f32.gmra.mxu0 %v598
    %v666 = vpop.f32.mrf.mxu0
    %v667 = vadd.f32 0.0, %v666
    %v668 = vpop.f32.mrf.mxu0
    %669 = vdwg.mxu0
    %v671 = vrot.slane %v667, 4
    %v673 = vadd.f32 %v164, %v671
    %v674 = vxor.u32 %v673, 2147483648
    %v675 = vmul.f32 %v674, 1.442695
    %v676 = vpow.pop %v675
    %v677 = vadd.f32 %v676, 1.0
    %v678 = vrcp.pop %v677
    %v679 = vmul.f32 1.0, %v678
    %v680 = vmul.f32 %v679, 2.0
    %v681 = vsub.f32 %v680, 1.0
    %v683 = vrot.slane %v587, 7
    %v685 = vmul.f32 %v679, %v683
    %687 = vrot.lane.b32.xlu0 %v681, 64
    %v688 = vpop.permute.xlu0 %687
    %v690 = vmul.f32 %v679, %v688
    %692 = vrot.lane.b32.xlu0 %v690, 32
    %v693 = vpop.permute.xlu0 %692
    %v695 = vadd.f32 %v685, %v693
    %v696 = vtanh.pop %v695
    %698 = vrot.lane.b32.xlu0 %v696, 64
    %v699 = vpop.permute.xlu0 %698
    %v701 = vmul.f32 %v679, %v699
    %v703 = vrot.slane %v701, 4
    %704 = vrot.lane.b32.xlu0 %v703, 32
    %v705 = vpop.permute.xlu0 %704
    %v706 = vsel %vm171, %v705, 0
    %708 = vmatprep.subr.mxu0 0.0
    %709 = vmatpush1.msra.mxu0 0.0
    %710 = vmatprep.subr.mxu0 0.0
    %711 = vmatpush1.msra.mxu0 0.0
    %712 = vmatprep.subr.mxu0 0.0
    %713 = vmatpush1.msra.mxu0 0.0
    %714 = vmatprep.subr.mxu0 0.0
    %715 = vmatpush1.msra.mxu0 0.0
    %716 = vmatprep.subr.mxu0 0.0
    %717 = vmatpush1.msra.mxu0 0.0
    %718 = vmatprep.subr.mxu0 0.0
    %719 = vmatpush1.msra.mxu0 0.0
    %720 = vmatprep.subr.mxu0 0.0
    %721 = vmatpush1.msra.mxu0 0.0
    %722 = vmatprep.subr.mxu0 0.0
    %723 = vmatpush1.msra.mxu0 0.0
    %724 = vmatprep.subr.mxu0 0.0
    %725 = vmatpush1.msra.mxu0 0.0
    %726 = vmatprep.subr.mxu0 0.0
    %727 = vmatpush1.msra.mxu0 0.0
    %728 = vmatprep.subr.mxu0 0.0
    %729 = vmatpush1.msra.mxu0 0.0
    %730 = vmatprep.subr.mxu0 0.0
    %731 = vmatpush1.msra.mxu0 0.0
    %732 = vmatprep.subr.mxu0 0.0
    %733 = vmatpush1.msra.mxu0 %v170
    %734 = vmatprep.subr.mxu0 0.0
    %735 = vmatpush1.msra.mxu0 %v169
    %736 = vmatprep.subr.mxu0 0.0
    %737 = vmatpush1.msra.mxu0 %v168
    %738 = vmatprep.subr.mxu0 0.0
    %739 = vmatpush1.msra.mxu0 %v167
    %740 = vmatprep.subr.mxu0 0.0
    %741 = vmatpush2.msra.mxu0 0.0
    %742 = vmatprep.subr.mxu0 0.0
    %743 = vmatpush2.msra.mxu0 0.0
    %744 = vmatprep.subr.mxu0 0.0
    %745 = vmatpush2.msra.mxu0 0.0
    %746 = vmatprep.subr.mxu0 0.0
    %747 = vmatpush2.msra.mxu0 0.0
    %748 = vmatprep.subr.mxu0 0.0
    %749 = vmatpush2.msra.mxu0 0.0
    %750 = vmatprep.subr.mxu0 0.0
    %751 = vmatpush2.msra.mxu0 0.0
    %752 = vmatprep.subr.mxu0 0.0
    %753 = vmatpush2.msra.mxu0 0.0
    %754 = vmatprep.subr.mxu0 0.0
    %755 = vmatpush2.msra.mxu0 0.0
    %756 = vmatprep.subr.mxu0 0.0
    %757 = vmatpush2.msra.mxu0 0.0
    %758 = vmatprep.subr.mxu0 0.0
    %759 = vmatpush2.msra.mxu0 0.0
    %760 = vmatprep.subr.mxu0 0.0
    %761 = vmatpush2.msra.mxu0 0.0
    %762 = vmatprep.subr.mxu0 0.0
    %763 = vmatpush2.msra.mxu0 0.0
    %764 = vmatprep.subr.mxu0 0.0
    %765 = vmatpush2.msra.mxu0 0.0
    %766 = vmatprep.subr.mxu0 0.0
    %767 = vmatpush2.msra.mxu0 0.0
    %768 = vmatprep.subr.mxu0 0.0
    %769 = vmatpush2.msra.mxu0 0.0
    %770 = vmatprep.subr.mxu0 0.0
    %771 = vmatpush2.msra.mxu0 0.0
    %772 = vmatprep.mubr.f32.mxu0 0.0
    %773 = vmatmul.mubr.f32.gmra.mxu0 %v706
    %v774 = vpop.f32.mrf.mxu0
    %v775 = vadd.f32 0.0, %v774
    %v776 = vpop.f32.mrf.mxu0
    %777 = vdwg.mxu0
    %v779 = vrot.slane %v775, 3
    %v781 = vadd.f32 %v164, %v779
    %v782 = vxor.u32 %v781, 2147483648
    %v783 = vmul.f32 %v782, 1.442695
    %v784 = vpow.pop %v783
    %v785 = vadd.f32 %v784, 1.0
    %v786 = vrcp.pop %v785
    %v787 = vmul.f32 1.0, %v786
    %v788 = vmul.f32 %v787, 2.0
    %v789 = vsub.f32 %v788, 1.0
    %v791 = vrot.slane %v695, 7
    %v793 = vmul.f32 %v787, %v791
    %795 = vrot.lane.b32.xlu0 %v789, 64
    %v796 = vpop.permute.xlu0 %795
    %v798 = vmul.f32 %v787, %v796
    %800 = vrot.lane.b32.xlu0 %v798, 32
    %v801 = vpop.permute.xlu0 %800
    %v803 = vadd.f32 %v793, %v801
    %v804 = vtanh.pop %v803
    %806 = vrot.lane.b32.xlu0 %v804, 64
    %v807 = vpop.permute.xlu0 %806
    %v809 = vmul.f32 %v787, %v807
    %v811 = vrot.slane %v809, 5
    %812 = vrot.lane.b32.xlu0 %v811, 32
    %v813 = vpop.permute.xlu0 %812
    %v814 = vsel %vm171, %v813, 0
    %816 = vmatprep.subr.mxu0 0.0
    %817 = vmatpush1.msra.mxu0 0.0
    %818 = vmatprep.subr.mxu0 0.0
    %819 = vmatpush1.msra.mxu0 0.0
    %820 = vmatprep.subr.mxu0 0.0
    %821 = vmatpush1.msra.mxu0 0.0
    %822 = vmatprep.subr.mxu0 0.0
    %823 = vmatpush1.msra.mxu0 0.0
    %824 = vmatprep.subr.mxu0 0.0
    %825 = vmatpush1.msra.mxu0 0.0
    %826 = vmatprep.subr.mxu0 0.0
    %827 = vmatpush1.msra.mxu0 0.0
    %828 = vmatprep.subr.mxu0 0.0
    %829 = vmatpush1.msra.mxu0 0.0
    %830 = vmatprep.subr.mxu0 0.0
    %831 = vmatpush1.msra.mxu0 0.0
    %832 = vmatprep.subr.mxu0 0.0
    %833 = vmatpush1.msra.mxu0 0.0
    %834 = vmatprep.subr.mxu0 0.0
    %835 = vmatpush1.msra.mxu0 0.0
    %836 = vmatprep.subr.mxu0 0.0
    %837 = vmatpush1.msra.mxu0 0.0
    %838 = vmatprep.subr.mxu0 0.0
    %839 = vmatpush1.msra.mxu0 0.0
    %840 = vmatprep.subr.mxu0 0.0
    %841 = vmatpush1.msra.mxu0 %v170
    %842 = vmatprep.subr.mxu0 0.0
    %843 = vmatpush1.msra.mxu0 %v169
    %844 = vmatprep.subr.mxu0 0.0
    %845 = vmatpush1.msra.mxu0 %v168
    %846 = vmatprep.subr.mxu0 0.0
    %847 = vmatpush1.msra.mxu0 %v167
    %848 = vmatprep.subr.mxu0 0.0
    %849 = vmatpush2.msra.mxu0 0.0
    %850 = vmatprep.subr.mxu0 0.0
    %851 = vmatpush2.msra.mxu0 0.0
    %852 = vmatprep.subr.mxu0 0.0
    %853 = vmatpush2.msra.mxu0 0.0
    %854 = vmatprep.subr.mxu0 0.0
    %855 = vmatpush2.msra.mxu0 0.0
    %856 = vmatprep.subr.mxu0 0.0
    %857 = vmatpush2.msra.mxu0 0.0
    %858 = vmatprep.subr.mxu0 0.0
    %859 = vmatpush2.msra.mxu0 0.0
    %860 = vmatprep.subr.mxu0 0.0
    %861 = vmatpush2.msra.mxu0 0.0
    %862 = vmatprep.subr.mxu0 0.0
    %863 = vmatpush2.msra.mxu0 0.0
    %864 = vmatprep.subr.mxu0 0.0
    %865 = vmatpush2.msra.mxu0 0.0
    %866 = vmatprep.subr.mxu0 0.0
    %867 = vmatpush2.msra.mxu0 0.0
    %868 = vmatprep.subr.mxu0 0.0
    %869 = vmatpush2.msra.mxu0 0.0
    %870 = vmatprep.subr.mxu0 0.0
    %871 = vmatpush2.msra.mxu0 0.0
    %872 = vmatprep.subr.mxu0 0.0
    %873 = vmatpush2.msra.mxu0 0.0
    %874 = vmatprep.subr.mxu0 0.0
    %875 = vmatpush2.msra.mxu0 0.0
    %876 = vmatprep.subr.mxu0 0.0
    %877 = vmatpush2.msra.mxu0 0.0
    %878 = vmatprep.subr.mxu0 0.0
    %879 = vmatpush2.msra.mxu0 0.0
    %880 = vmatprep.mubr.f32.mxu0 0.0
    %881 = vmatmul.mubr.f32.gmra.mxu0 %v814
    %v882 = vpop.f32.mrf.mxu0
    %v883 = vadd.f32 0.0, %v882
    %v884 = vpop.f32.mrf.mxu0
    %885 = vdwg.mxu0
    %v887 = vrot.slane %v883, 2
    %v889 = vadd.f32 %v164, %v887
    %v890 = vxor.u32 %v889, 2147483648
    %v891 = vmul.f32 %v890, 1.442695
    %v892 = vpow.pop %v891
    %v893 = vadd.f32 %v892, 1.0
    %v894 = vrcp.pop %v893
    %v895 = vmul.f32 1.0, %v894
    %v896 = vmul.f32 %v895, 2.0
    %v897 = vsub.f32 %v896, 1.0
    %v899 = vrot.slane %v803, 7
    %v901 = vmul.f32 %v895, %v899
    %903 = vrot.lane.b32.xlu0 %v897, 64
    %v904 = vpop.permute.xlu0 %903
    %v906 = vmul.f32 %v895, %v904
    %908 = vrot.lane.b32.xlu0 %v906, 32
    %v909 = vpop.permute.xlu0 %908
    %v911 = vadd.f32 %v901, %v909
    %v912 = vtanh.pop %v911
    %914 = vrot.lane.b32.xlu0 %v912, 64
    %v915 = vpop.permute.xlu0 %914
    %v917 = vmul.f32 %v895, %v915
    %v919 = vrot.slane %v917, 6
    %920 = vrot.lane.b32.xlu0 %v919, 32
    %v921 = vpop.permute.xlu0 %920
    %v922 = vsel %vm171, %v921, 0
    %924 = vmatprep.subr.mxu0 0.0
    %925 = vmatpush1.msra.mxu0 0.0
    %926 = vmatprep.subr.mxu0 0.0
    %927 = vmatpush1.msra.mxu0 0.0
    %928 = vmatprep.subr.mxu0 0.0
    %929 = vmatpush1.msra.mxu0 0.0
    %930 = vmatprep.subr.mxu0 0.0
    %931 = vmatpush1.msra.mxu0 0.0
    %932 = vmatprep.subr.mxu0 0.0
    %933 = vmatpush1.msra.mxu0 0.0
    %934 = vmatprep.subr.mxu0 0.0
    %935 = vmatpush1.msra.mxu0 0.0
    %936 = vmatprep.subr.mxu0 0.0
    %937 = vmatpush1.msra.mxu0 0.0
    %938 = vmatprep.subr.mxu0 0.0
    %939 = vmatpush1.msra.mxu0 0.0
    %940 = vmatprep.subr.mxu0 0.0
    %941 = vmatpush1.msra.mxu0 0.0
    %942 = vmatprep.subr.mxu0 0.0
    %943 = vmatpush1.msra.mxu0 0.0
    %944 = vmatprep.subr.mxu0 0.0
    %945 = vmatpush1.msra.mxu0 0.0
    %946 = vmatprep.subr.mxu0 0.0
    %947 = vmatpush1.msra.mxu0 0.0
    %948 = vmatprep.subr.mxu0 0.0
    %949 = vmatpush1.msra.mxu0 %v170
    %950 = vmatprep.subr.mxu0 0.0
    %951 = vmatpush1.msra.mxu0 %v169
    %952 = vmatprep.subr.mxu0 0.0
    %953 = vmatpush1.msra.mxu0 %v168
    %954 = vmatprep.subr.mxu0 0.0
    %955 = vmatpush1.msra.mxu0 %v167
    %956 = vmatprep.subr.mxu0 0.0
    %957 = vmatpush2.msra.mxu0 0.0
    %958 = vmatprep.subr.mxu0 0.0
    %959 = vmatpush2.msra.mxu0 0.0
    %960 = vmatprep.subr.mxu0 0.0
    %961 = vmatpush2.msra.mxu0 0.0
    %962 = vmatprep.subr.mxu0 0.0
    %963 = vmatpush2.msra.mxu0 0.0
    %964 = vmatprep.subr.mxu0 0.0
    %965 = vmatpush2.msra.mxu0 0.0
    %966 = vmatprep.subr.mxu0 0.0
    %967 = vmatpush2.msra.mxu0 0.0
    %968 = vmatprep.subr.mxu0 0.0
    %969 = vmatpush2.msra.mxu0 0.0
    %970 = vmatprep.subr.mxu0 0.0
    %971 = vmatpush2.msra.mxu0 0.0
    %972 = vmatprep.subr.mxu0 0.0
    %973 = vmatpush2.msra.mxu0 0.0
    %974 = vmatprep.subr.mxu0 0.0
    %975 = vmatpush2.msra.mxu0 0.0
    %976 = vmatprep.subr.mxu0 0.0
    %977 = vmatpush2.msra.mxu0 0.0
    %978 = vmatprep.subr.mxu0 0.0
    %979 = vmatpush2.msra.mxu0 0.0
    %980 = vmatprep.subr.mxu0 0.0
    %981 = vmatpush2.msra.mxu0 0.0
    %982 = vmatprep.subr.mxu0 0.0
    %983 = vmatpush2.msra.mxu0 0.0
    %984 = vmatprep.subr.mxu0 0.0
    %985 = vmatpush2.msra.mxu0 0.0
    %986 = vmatprep.subr.mxu0 0.0
    %987 = vmatpush2.msra.mxu0 0.0
    %988 = vmatprep.mubr.f32.mxu0 0.0
    %989 = vmatmul.mubr.f32.gmra.mxu0 %v922
    %v990 = vpop.f32.mrf.mxu0
    %v991 = vadd.f32 0.0, %v990
    %v992 = vpop.f32.mrf.mxu0
    %993 = vdwg.mxu0
    %v995 = vrot.slane %v991, 1
    %v997 = vadd.f32 %v164, %v995
    %v998 = vxor.u32 %v997, 2147483648
    %v999 = vmul.f32 %v998, 1.442695
    %v1000 = vpow.pop %v999
    %v1001 = vadd.f32 %v1000, 1.0
    %v1002 = vrcp.pop %v1001
    %v1003 = vmul.f32 1.0, %v1002
    %v1004 = vmul.f32 %v1003, 2.0
    %v1005 = vsub.f32 %v1004, 1.0
    %v1007 = vrot.slane %v911, 7
    %v1009 = vmul.f32 %v1003, %v1007
    %1011 = vrot.lane.b32.xlu0 %v1005, 64
    %v1012 = vpop.permute.xlu0 %1011
    %v1014 = vmul.f32 %v1003, %v1012
    %1016 = vrot.lane.b32.xlu0 %v1014, 32
    %v1017 = vpop.permute.xlu0 %1016
    %v1019 = vadd.f32 %v1009, %v1017
    %v1020 = vtanh.pop %v1019
    %1022 = vrot.lane.b32.xlu0 %v1020, 64
    %v1023 = vpop.permute.xlu0 %1022
    %v1025 = vmul.f32 %v1003, %v1023
    %vm1026 = vcmask 1040384
    %v1027 = vsel %vm1026, %v270, %v377
    %vm1028 = vcmask 1041408
    %v1029 = vsel %vm1028, %v1027, %v485
    %vm1030 = vcmask 1042432
    %v1031 = vsel %vm1030, %v1029, %v593
    %vm1032 = vcmask 1043456
    %v1033 = vsel %vm1032, %v1031, %v701
    %vm1034 = vcmask 1044480
    %v1035 = vsel %vm1034, %v1033, %v809
    %vm1036 = vcmask 1045504
    %v1037 = vsel %vm1036, %v1035, %v917
    %vm1038 = vcmask 1046528
    %v1039 = vsel %vm1038, %v1037, %v1025
    %v1041 = vrot.slane %v1025, 7
    %v1043 = vrot.slane %v917, 5
    %v1045 = vrot.slane %v809, 3
    %v1047 = vrot.slane %v701, 1
    %v1049 = vrot.slane %v593, 7
    %v1051 = vrot.slane %v485, 5
    %v1053 = vrot.slane %v377, 3
    %v1055 = vrot.slane %v270, 1
    %v1057 = vsel %vm1026, %v1041, %v1043
    %v1058 = vsel %vm1028, %v1057, %v1045
    %v1059 = vsel %vm1030, %v1058, %v1047
    %v1060 = vsel %vm1032, %v1059, %v1049
    %v1061 = vsel %vm1034, %v1060, %v1051
    %v1062 = vsel %vm1036, %v1061, %v1053
    %v1063 = vsel %vm1038, %v1062, %v1055
    %v1064 = vlaneseq
    %v1065 = vand.u32 %v1064, 127
    %vm1066 = vcmp.lt.s32.totalorder %v1065, 16
    %1068 = vrot.lane.b32.xlu0 %v1039, 32
    %v1069 = vpop.permute.xlu0 %1068
    %1072 = vrot.lane.b32.xlu0 %v1063, 32
    %v1073 = vpop.permute.xlu0 %1072
    %v1075 = vsel %vm1066, %v1069, %v1073
    %v1076 = vld [vmem:[#allocation8] sm:$0xff]
    %v1077 = vld [vmem:[#allocation8 + $0x8] sm:$0xff]
    %v1078 = vld [vmem:[#allocation8 + $0x10] sm:$0xff]
    %v1079 = vld [vmem:[#allocation8 + $0x18] sm:$0xff]
    %v1080 = vld [vmem:[%s5] sm:$0x1]
    %v1082 = vlaneseq
    %v1083 = vshrl.u32 %v1082, 7
    %v1084 = vsub.s32 0, %v1083
    %v1085 = vrot.slane %v1080, %v1084
    %v1088 = vsel %vm171, %v1075, 0
    %1090 = vmatprep.subr.mxu0 0.0
    %1091 = vmatpush1.msra.mxu0 0.0
    %1092 = vmatprep.subr.mxu0 0.0
    %1093 = vmatpush1.msra.mxu0 0.0
    %1094 = vmatprep.subr.mxu0 0.0
    %1095 = vmatpush1.msra.mxu0 0.0
    %1096 = vmatprep.subr.mxu0 0.0
    %1097 = vmatpush1.msra.mxu0 0.0
    %1098 = vmatprep.subr.mxu0 0.0
    %1099 = vmatpush1.msra.mxu0 0.0
    %1100 = vmatprep.subr.mxu0 0.0
    %1101 = vmatpush1.msra.mxu0 0.0
    %1102 = vmatprep.subr.mxu0 0.0
    %1103 = vmatpush1.msra.mxu0 0.0
    %1104 = vmatprep.subr.mxu0 0.0
    %1105 = vmatpush1.msra.mxu0 0.0
    %1106 = vmatprep.subr.mxu0 0.0
    %1107 = vmatpush1.msra.mxu0 0.0
    %1108 = vmatprep.subr.mxu0 0.0
    %1109 = vmatpush1.msra.mxu0 0.0
    %1110 = vmatprep.subr.mxu0 0.0
    %1111 = vmatpush1.msra.mxu0 0.0
    %1112 = vmatprep.subr.mxu0 0.0
    %1113 = vmatpush1.msra.mxu0 0.0
    %1114 = vmatprep.subr.mxu0 0.0
    %1115 = vmatpush1.msra.mxu0 %v1079
    %1116 = vmatprep.subr.mxu0 0.0
    %1117 = vmatpush1.msra.mxu0 %v1078
    %1118 = vmatprep.subr.mxu0 0.0
    %1119 = vmatpush1.msra.mxu0 %v1077
    %1120 = vmatprep.subr.mxu0 0.0
    %1121 = vmatpush1.msra.mxu0 %v1076
    %1122 = vmatprep.subr.mxu0 0.0
    %1123 = vmatpush2.msra.mxu0 0.0
    %1124 = vmatprep.subr.mxu0 0.0
    %1125 = vmatpush2.msra.mxu0 0.0
    %1126 = vmatprep.subr.mxu0 0.0
    %1127 = vmatpush2.msra.mxu0 0.0
    %1128 = vmatprep.subr.mxu0 0.0
    %1129 = vmatpush2.msra.mxu0 0.0
    %1130 = vmatprep.subr.mxu0 0.0
    %1131 = vmatpush2.msra.mxu0 0.0
    %1132 = vmatprep.subr.mxu0 0.0
    %1133 = vmatpush2.msra.mxu0 0.0
    %1134 = vmatprep.subr.mxu0 0.0
    %1135 = vmatpush2.msra.mxu0 0.0
    %1136 = vmatprep.subr.mxu0 0.0
    %1137 = vmatpush2.msra.mxu0 0.0
    %1138 = vmatprep.subr.mxu0 0.0
    %1139 = vmatpush2.msra.mxu0 0.0
    %1140 = vmatprep.subr.mxu0 0.0
    %1141 = vmatpush2.msra.mxu0 0.0
    %1142 = vmatprep.subr.mxu0 0.0
    %1143 = vmatpush2.msra.mxu0 0.0
    %1144 = vmatprep.subr.mxu0 0.0
    %1145 = vmatpush2.msra.mxu0 0.0
    %1146 = vmatprep.subr.mxu0 0.0
    %1147 = vmatpush2.msra.mxu0 0.0
    %1148 = vmatprep.subr.mxu0 0.0
    %1149 = vmatpush2.msra.mxu0 0.0
    %1150 = vmatprep.subr.mxu0 0.0
    %1151 = vmatpush2.msra.mxu0 0.0
    %1152 = vmatprep.subr.mxu0 0.0
    %1153 = vmatpush2.msra.mxu0 0.0
    %1154 = vmatprep.mubr.f32.mxu0 0.0
    %1155 = vmatmul.mubr.f32.gmra.mxu0 %v1088
    %v1156 = vpop.f32.mrf.mxu0
    %v1157 = vadd.f32 %v1085, %v1156
    %v1158 = vpop.f32.mrf.mxu0
    %1159 = vdwg.mxu0
    %v1160 = vrot.slane %v1157, 4
    %v1161 = vmax.f32 %v1157, %v1160
    %v1162 = vrot.slane %v1161, 2
    %v1163 = vmax.f32 %v1161, %v1162
    %v1164 = vrot.slane %v1163, 1
    %v1165 = vmax.f32 %v1163, %v1164
    %v1166 = vsub.f32 %v1157, %v1165
    %v1167 = vmul.f32 %v1166, 1.442695
    %v1168 = vpow.pop %v1167
    %v1169 = vrot.slane %v1168, 4
    %v1170 = vadd.f32 %v1168, %v1169
    %v1171 = vrot.slane %v1170, 2
    %v1172 = vadd.f32 %v1170, %v1171
    %v1173 = vrot.slane %v1172, 1
    %v1174 = vadd.f32 %v1172, %v1173
    %v1175 = vrcp.pop %v1174
    %v1176 = vmul.f32 %v1168, %v1175
    %1177 = vst [vmem:[#allocation10] sm:$0xff] %v1176
    // Predicated region
    $region42: #{tpu_custom_call.1} parent=1 // pred_check
      _
    $region43: #{tpu_custom_call.1} parent=1 // pred_check_branch
      %1179 = sbr.rel (0) target = $region45
    $region44: #{tpu_custom_call.1} parent=1 // pred_region
      %s1181 = ssub.s32 128, 128
      %1182 = vsyncadd [#allocation4], %s1181
      %s1184 = sshll.u32 [#allocation10], 4
      %s1185 = int_to_ptr.vmem [resolvable:$true] %s1184
      %1187 = dma.vmem_to_hbm [thread:$0]  %s1185, 128, %s6, [#allocation4]
    $region45: #{tpu_custom_call.1} parent=1 // pred_fallthru
      _
    // Predicated region
    $region46: #{tpu_custom_call.1} parent=1 // pred_check
      _
    $region47: #{tpu_custom_call.1} parent=1 // pred_check_branch
      %1189 = sbr.rel (0) target = $region49
    $region48: #{tpu_custom_call.1} parent=1 // pred_region
      %1190 = dma.done [#allocation4], 128
    $region49: #{tpu_custom_call.1} parent=1 // pred_fallthru
      _
    %1191 = vsyncpa [#allocation3], 1
    %1192 = vsyncpa [#allocation6], 1
    %1193 = vsyncpa [#allocation9], 1
    %1194 = vsyncpa [#allocation4], 1

</llo_original>
